<compile_context>
chip_gen: v5e
topology: v5e:2x2
jax: 0.10.0
libtpu: 0.0.40
codegen_flags: <defaults>
</compile_context>

<pallas_src>
import jax
import jax.numpy as jnp
from jax.experimental import pallas as pl
from jax.experimental.pallas import tpu as pltpu

EPS = 1e-5

# bf16 operands feed the MXU at native rate on v6e/v7x (and ~2x on v5e); set to
# jnp.float32 for bit-closer parity with the f32 PyTorch reference.
MATMUL_DTYPE = jnp.bfloat16

K1_PAD = 32                 # conv1 contraction 1*5*5 = 25 -> 32
C1_PAD = 8                  # conv1 out channels 6 -> 8
C2_PAD = 16                 # conv2 out channels 12 -> 16
K2_PAD = C1_PAD * 25        # conv2 contraction over padded in-channels = 200

_VMEM = pl.BlockSpec(memory_space=pltpu.MemorySpace.VMEM)
_CPARAMS = pltpu.CompilerParams(vmem_limit_bytes=32 * 1024 * 1024)


# ---------------------------------------------------------------------------
# Kernel A: conv1 + BN + ReLU + 2x2 max-pool  (one merged matmul over 4 phases)
# ---------------------------------------------------------------------------
def conv1_stage_kernel(p_ref, w_ref, bn_ref, o_ref, z_ref):
    """p_ref: [K1_PAD, 4*M1] patches (phases concatenated along lanes, per-phase
    column order (n, oh/2, ow/2));  w_ref: [C1_PAD, K1_PAD];  bn_ref: [C1_PAD, 2]
    (gamma, beta; pad channels have gamma = 0);  o_ref: [C1_PAD, M1] pooled
    activations;  z_ref: [C1_PAD, 4*M1] f32 scratch (pre-pool activations)."""
    m4 = p_ref.shape[1]
    m1 = o_ref.shape[1]

    # Single MXU dot for all four pooling-window phases (f32 accumulation).
    y = jnp.dot(w_ref[...], p_ref[...], preferred_element_type=jnp.float32)

    # BatchNorm batch statistics over all N*OH*OW conv outputs (the four phase
    # blocks partition them exactly).  One-pass mean / E[x^2].
    inv_m = 1.0 / m4
    mean = jnp.sum(y, axis=1, keepdims=True) * inv_m
    var = jnp.sum(y * y, axis=1, keepdims=True) * inv_m - mean * mean
    scale = bn_ref[:, 0:1] * jax.lax.rsqrt(var + EPS)
    shift = bn_ref[:, 1:2] - mean * scale

    z_ref[...] = jnp.maximum(y * scale + shift, 0.0)

    # 2x2 max-pool == elementwise max over the four phase blocks.
    pooled = z_ref[:, pl.ds(0, m1)]
    for q in range(1, 4):
        pooled = jnp.maximum(pooled, z_ref[:, pl.ds(q * m1, m1)])
    o_ref[...] = pooled.astype(o_ref.dtype)


def conv1_stage(p1, w1, bn1, n):
    m1 = n * 144
    cost = pl.CostEstimate(
        flops=int(2 * C1_PAD * K1_PAD * 4 * m1 + 10 * C1_PAD * 4 * m1),
        transcendentals=int(C1_PAD),
        bytes_accessed=int(2 * K1_PAD * 4 * m1 + 2 * C1_PAD * K1_PAD
                           + 4 * C1_PAD * 2 + 2 * C1_PAD * m1),
    )
    return pl.pallas_call(
        conv1_stage_kernel,
        out_shape=jax.ShapeDtypeStruct((C1_PAD, m1), MATMUL_DTYPE),
        in_specs=[_VMEM, _VMEM, _VMEM],
        out_specs=_VMEM,
        scratch_shapes=[pltpu.VMEM((C1_PAD, 4 * m1), jnp.float32)],
        compiler_params=_CPARAMS,
        cost_estimate=cost,
    )(p1, w1, bn1)


# ---------------------------------------------------------------------------
# Kernel B: conv2 + BN + ReLU + pool + fc1 + BN + ReLU + fc2 + BN + ReLU + out
# ---------------------------------------------------------------------------
def conv2_fc_kernel(p_ref, w2_ref, bn2_ref, w1s_ref, bnf1_ref, wf2_ref,
                    bnf2_ref, wo_ref, bo_ref, o_ref, pool_ref):
    """p_ref : [4*16*N, K2_PAD] conv2 patches, rows ordered (phase, s, n),
               s = 4*oh2 + ow2 in [0, 16)
       w2_ref: [K2_PAD, C2_PAD];  bn2_ref: [2, C2_PAD] rows (gamma, beta)
       w1s_ref: [16, C2_PAD, 120]  fc1 weights regrouped per spatial position s
       bnf1/bnf2: [2, 120] / [2, 60];  wf2: [120, 60];  wo: [60, 10];  bo: [1, 10]
       o_ref : [N, 10] logits;  pool_ref: [16*N, C2_PAD] f32 scratch."""
    n = o_ref.shape[0]
    qrows = 16 * n                                   # rows per pooling phase

    # conv2 for all four phases in one MXU dot (f32 accumulation).
    y = jnp.dot(p_ref[...], w2_ref[...], preferred_element_type=jnp.float32)

    inv_m = 1.0 / y.shape[0]
    mean = jnp.sum(y, axis=0, keepdims=True) * inv_m
    var = jnp.sum(y * y, axis=0, keepdims=True) * inv_m - mean * mean
    scale = bn2_ref[0:1, :] * jax.lax.rsqrt(var + EPS)
    shift = bn2_ref[1:2, :] - mean * scale
    z = jnp.maximum(y * scale + shift, 0.0)

    # 2x2 max-pool == max over the four (sublane-aligned) phase row-blocks.
    pool_ref[...] = jnp.maximum(
        jnp.maximum(z[0:qrows], z[qrows:2 * qrows]),
        jnp.maximum(z[2 * qrows:3 * qrows], z[3 * qrows:4 * qrows]))

    # fc1: contract over (spatial position s, channel c) directly from the
    # pooled activations' native layout -- one small accumulated matmul per s,
    # no relayout/transpose needed.
    t = jnp.zeros((n, wf2_ref.shape[0]), jnp.float32)
    for s in range(16):
        chunk = pool_ref[pl.ds(s * n, n), :].astype(MATMUL_DTYPE)   # [N, C2_PAD]
        t = t + jnp.dot(chunk, w1s_ref[s], preferred_element_type=jnp.float32)

    def bn1d_relu(u, bn_ref):
        mu = jnp.mean(u, axis=0, keepdims=True)
        v = jnp.mean(u * u, axis=0, keepdims=True) - mu * mu        # biased var
        sc = bn_ref[0:1, :] * jax.lax.rsqrt(v + EPS)
        sh = bn_ref[1:2, :] - mu * sc
        return jnp.maximum(u * sc + sh, 0.0)

    t = bn1d_relu(t, bnf1_ref)                                       # fc1 BN+ReLU
    t = jnp.dot(t.astype(MATMUL_DTYPE), wf2_ref[...],
                preferred_element_type=jnp.float32)                  # fc2
    t = bn1d_relu(t, bnf2_ref)                                       # fc2 BN+ReLU
    o_ref[...] = jnp.dot(t.astype(MATMUL_DTYPE), wo_ref[...],
                         preferred_element_type=jnp.float32) + bo_ref[...]


def conv2_fc_stage(p2, prm, n):
    rows = 4 * 16 * n
    cost = pl.CostEstimate(
        flops=int(2 * rows * K2_PAD * C2_PAD + 2 * 16 * n * C2_PAD * 120
                  + 2 * n * 120 * 60 + 2 * n * 60 * 10 + 10 * rows * C2_PAD),
        transcendentals=int(C2_PAD + 120 + 60),
        bytes_accessed=int(2 * rows * K2_PAD + 2 * K2_PAD * C2_PAD
                           + 2 * 16 * C2_PAD * 120 + 2 * 120 * 60 + 2 * 60 * 10
                           + 4 * (2 * (C2_PAD + 120 + 60) + 10 + n * 10)),
    )
    return pl.pallas_call(
        conv2_fc_kernel,
        out_shape=jax.ShapeDtypeStruct((n, 10), jnp.float32),
        in_specs=[_VMEM] * 9,
        out_specs=_VMEM,
        scratch_shapes=[pltpu.VMEM((16 * n, C2_PAD), jnp.float32)],
        compiler_params=_CPARAMS,
        cost_estimate=cost,
    )(p2, prm["w2"], prm["bn2"], prm["w1s"], prm["bnf1"],
      prm["wf2"], prm["bnf2"], prm["wo"], prm["bo"])


# ---------------------------------------------------------------------------
# Wrapper glue: pool-phase im2col (XLA strided slices, runs once per stage)
# ---------------------------------------------------------------------------
def _conv1_patches(x, n):
    """x: [N, 28, 28] -> [K1_PAD, 4*N*144]; phases (dy,dx) concatenated along
    columns; per-phase column order (n, oh/2, ow/2); row order k = 5*i + j."""
    poh = pow_ = 12
    cols = []
    for dy in (0, 1):
        for dx in (0, 1):
            taps = []
            for i in range(5):
                for j in range(5):
                    t = jax.lax.slice(
                        x, (0, dy + i, dx + j),
                        (n, dy + i + 2 * poh - 1, dx + j + 2 * pow_ - 1),
                        (1, 2, 2))                                  # [N, 12, 12]
                    taps.append(t)
            cols.append(jnp.stack(taps, axis=0).reshape(25, n * poh * pow_))
    p = jnp.concatenate(cols, axis=1)                               # [25, 4*N*144]
    return jnp.pad(p, ((0, K1_PAD - 25), (0, 0))).astype(MATMUL_DTYPE)


def _conv2_patches(a, n):
    """a: [C1_PAD, N, 12, 12] pooled conv1 activations ->
    [4*16*N, K2_PAD]; rows ordered (phase, s, n); cols (cin, ki, kj)."""
    poh = pow_ = 4
    blocks = []
    for dy in (0, 1):
        for dx in (0, 1):
            taps = []
            for i in range(5):
                for j in range(5):
                    t = jax.lax.slice(
                        a, (0, 0, dy + i, dx + j),
                        (C1_PAD, n, dy + i + 2 * poh - 1, dx + j + 2 * pow_ - 1),
                        (1, 1, 2, 2))                               # [8, N, 4, 4]
                    taps.append(t)
            p = jnp.stack(taps, axis=1)                             # [8, 25, N, 4, 4]
            p = p.transpose(3, 4, 2, 0, 1)                          # [4, 4, N, 8, 25]
            blocks.append(p.reshape(16 * n, K2_PAD))
    return jnp.concatenate(blocks, axis=0).astype(MATMUL_DTYPE)     # [4*16*N, 200]


# ---------------------------------------------------------------------------
# Parameters: PyTorch-native init, then padded / transposed / packed for TPU
# ---------------------------------------------------------------------------
def init_torch_like_params():
    key = jax.random.PRNGKey(0)
    ks = jax.random.split(key, 6)

    def uni(k, shape, fan_in):
        b = 1.0 / jnp.sqrt(float(fan_in))
        return jax.random.uniform(k, shape, jnp.float32, -b, b)

    # conv1/conv2/fc1/fc2 biases are omitted on purpose: each is immediately
    # followed by a BatchNorm in batch-statistics mode, which subtracts the
    # per-channel/per-feature batch mean and cancels any constant bias exactly.
    return {
        "conv1_w": uni(ks[0], (6, 1, 5, 5), 25),
        "conv2_w": uni(ks[1], (12, 6, 5, 5), 150),
        "fc1_w": uni(ks[2], (120, 192), 192),
        "fc2_w": uni(ks[3], (60, 120), 120),
        "out_w": uni(ks[4], (10, 60), 60),
        "out_b": uni(ks[5], (10,), 60),
        "bn1_g": jnp.ones((6,), jnp.float32), "bn1_b": jnp.zeros((6,), jnp.float32),
        "bn2_g": jnp.ones((12,), jnp.float32), "bn2_b": jnp.zeros((12,), jnp.float32),
        "bnf1_g": jnp.ones((120,), jnp.float32), "bnf1_b": jnp.zeros((120,), jnp.float32),
        "bnf2_g": jnp.ones((60,), jnp.float32), "bnf2_b": jnp.zeros((60,), jnp.float32),
    }


def prepare_params(tp):
    p = {}
    # conv1: [6,1,5,5] -> [C1_PAD, K1_PAD]; rows = out channels (padded), cols = taps.
    w1 = tp["conv1_w"].reshape(6, 25)
    p["w1"] = jnp.pad(w1, ((0, C1_PAD - 6), (0, K1_PAD - 25))).astype(MATMUL_DTYPE)
    p["bn1"] = jnp.stack([jnp.pad(tp["bn1_g"], (0, C1_PAD - 6)),       # gamma (pad = 0)
                          jnp.pad(tp["bn1_b"], (0, C1_PAD - 6))], axis=1)   # [8, 2]
    # conv2: [12,6,5,5] -> [K2_PAD, C2_PAD]; rows (cin, ki, kj) over padded cin.
    w2 = tp["conv2_w"].transpose(1, 2, 3, 0).reshape(150, 12)
    p["w2"] = jnp.pad(w2, ((0, K2_PAD - 150), (0, C2_PAD - 12))).astype(MATMUL_DTYPE)
    p["bn2"] = jnp.stack([jnp.pad(tp["bn2_g"], (0, C2_PAD - 12)),
                          jnp.pad(tp["bn2_b"], (0, C2_PAD - 12))], axis=0)   # [2, 16]
    # fc1: [120, 192] -> [16, C2_PAD, 120], grouped per conv2 spatial position s
    # (PyTorch flatten order: feature = c*16 + s, s = 4*oh2 + ow2).  This removes
    # the conv2 -> fc transpose from the forward pass entirely.
    w1s = tp["fc1_w"].T.reshape(12, 16, 120).transpose(1, 0, 2)              # [16,12,120]
    p["w1s"] = jnp.pad(w1s, ((0, 0), (0, C2_PAD - 12), (0, 0))).astype(MATMUL_DTYPE)
    p["bnf1"] = jnp.stack([tp["bnf1_g"], tp["bnf1_b"]], axis=0)              # [2, 120]
    p["wf2"] = tp["fc2_w"].T.astype(MATMUL_DTYPE)                            # [120, 60]
    p["bnf2"] = jnp.stack([tp["bnf2_g"], tp["bnf2_b"]], axis=0)              # [2, 60]
    p["wo"] = tp["out_w"].T.astype(MATMUL_DTYPE)                             # [60, 10]
    p["bo"] = tp["out_b"].reshape(1, 10)
    return p


# ---------------------------------------------------------------------------
# Forward pass (mirrors Network.forward; BN in training mode / batch stats)
# ---------------------------------------------------------------------------
@jax.jit
def network_forward(x_nchw, prm):
    n = x_nchw.shape[0]
    x = x_nchw.astype(MATMUL_DTYPE).reshape(n, 28, 28)          # Cin = 1

    # conv1 + BN + ReLU (28 -> 24) + pool (24 -> 12), one fused kernel.
    p1 = _conv1_patches(x, n)
    a1 = conv1_stage(p1, prm["w1"], prm["bn1"], n)              # [8, N*144]
    a1 = a1.reshape(C1_PAD, n, 12, 12)

    # conv2 + BN + ReLU (12 -> 8) + pool (8 -> 4) + fc1/fc2/out, one fused kernel.
    p2 = _conv2_patches(a1, n)
    return conv2_fc_stage(p2, prm, n)                           # [N, 10]


if __name__ == "__main__":
    # Input must be 28x28 so two (conv5 + pool2) stages yield 12*4*4 = 192 features.
    x = jax.random.normal(jax.random.PRNGKey(0), (4, 1, 28, 28), dtype=jnp.float32)
    params = prepare_params(init_torch_like_params())
    out = jax.block_until_ready(network_forward(x, params))
    assert out.shape == (4, 10) and out.dtype == jnp.float32
    assert bool(jnp.all(jnp.isfinite(out)))
    print("KERNEL_OK")
</pallas_src>

<mosaic_0001>
module attributes {stable_mosaic.version = 11 : i64} {
  func.func @conv1_stage_kernel(%arg0: memref<32x2304xbf16, #tpu.memory_space<vmem>>, %arg1: memref<8x32xbf16, #tpu.memory_space<vmem>>, %arg2: memref<8x2xf32, #tpu.memory_space<vmem>>, %arg3: memref<8x576xbf16, #tpu.memory_space<vmem>>, %arg4: memref<8x2304xf32, #tpu.memory_space<vmem>>) attributes {dimension_semantics = [], scalar_prefetch = 0 : i64, scratch_operands = 1 : i64, tpu.core_type = #tpu.core_type<tc>} {
    %c0 = arith.constant 0 : index
    %c0_0 = arith.constant 0 : index
    %0 = vector.load %arg1[%c0, %c0_0] : memref<8x32xbf16, #tpu.memory_space<vmem>>, vector<8x32xbf16>
    %c0_1 = arith.constant 0 : index
    %c0_2 = arith.constant 0 : index
    %1 = vector.load %arg0[%c0_1, %c0_2] : memref<32x2304xbf16, #tpu.memory_space<vmem>>, vector<32x2304xbf16>
    %cst = arith.constant dense<0.000000e+00> : vector<8x2304xf32>
    %2 = tpu.matmul %0, %1, %cst {dimension_numbers = #tpu.dot_dimension_numbers<[1], [0], [0], [1], [0, 0, 1, 1], [], []>} : vector<8x32xbf16>, vector<32x2304xbf16>, vector<8x2304xf32> -> vector<8x2304xf32>
    %cst_3 = arith.constant dense<0.000000e+00> : vector<8xf32>
    %3 = vector.multi_reduction <add>, %2, %cst_3 [1] : vector<8x2304xf32> to vector<8xf32>
    %4 = vector.shape_cast %3 : vector<8xf32> to vector<8x1xf32>
    %cst_4 = arith.constant 4.34027781E-4 : f32
    %5 = vector.broadcast %cst_4 : f32 to vector<8x1xf32>
    %6 = arith.mulf %4, %5 : vector<8x1xf32>
    %7 = arith.mulf %2, %2 : vector<8x2304xf32>
    %cst_5 = arith.constant dense<0.000000e+00> : vector<8xf32>
    %8 = vector.multi_reduction <add>, %7, %cst_5 [1] : vector<8x2304xf32> to vector<8xf32>
    %9 = vector.shape_cast %8 : vector<8xf32> to vector<8x1xf32>
    %cst_6 = arith.constant 4.34027781E-4 : f32
    %10 = vector.broadcast %cst_6 : f32 to vector<8x1xf32>
    %11 = arith.mulf %9, %10 : vector<8x1xf32>
    %12 = arith.mulf %6, %6 : vector<8x1xf32>
    %13 = arith.subf %11, %12 : vector<8x1xf32>
    %c0_7 = arith.constant 0 : index
    %c0_8 = arith.constant 0 : index
    %14 = vector.load %arg2[%c0_7, %c0_8] : memref<8x2xf32, #tpu.memory_space<vmem>>, vector<8x1xf32>
    %cst_9 = arith.constant 9.99999974E-6 : f32
    %15 = vector.broadcast %cst_9 : f32 to vector<8x1xf32>
    %16 = arith.addf %13, %15 : vector<8x1xf32>
    %17 = math.rsqrt %16 : vector<8x1xf32>
    %18 = arith.mulf %14, %17 : vector<8x1xf32>
    %c0_10 = arith.constant 0 : index
    %c1 = arith.constant 1 : index
    %19 = vector.load %arg2[%c0_10, %c1] : memref<8x2xf32, #tpu.memory_space<vmem>>, vector<8x1xf32>
    %20 = arith.mulf %6, %18 : vector<8x1xf32>
    %21 = arith.subf %19, %20 : vector<8x1xf32>
    %22 = vector.broadcast %18 : vector<8x1xf32> to vector<8x2304xf32>
    %23 = arith.mulf %2, %22 : vector<8x2304xf32>
    %24 = vector.broadcast %21 : vector<8x1xf32> to vector<8x2304xf32>
    %25 = arith.addf %23, %24 : vector<8x2304xf32>
    %cst_11 = arith.constant 0.000000e+00 : f32
    %26 = vector.broadcast %cst_11 : f32 to vector<8x2304xf32>
    %27 = arith.maximumf %25, %26 : vector<8x2304xf32>
    %c0_12 = arith.constant 0 : index
    %c0_13 = arith.constant 0 : index
    %28 = vector.load %arg4[%c0_12, %c0_13] : memref<8x2304xf32, #tpu.memory_space<vmem>>, vector<8x2304xf32>
    tpu.vector_store %arg4[%c0_12, %c0_13], %27 {strides = array<i32>} : memref<8x2304xf32, #tpu.memory_space<vmem>>, vector<8x2304xf32>,
    %c0_14 = arith.constant 0 : index
    %c0_15 = arith.constant 0 : index
    %29 = vector.load %arg4[%c0_14, %c0_15] : memref<8x2304xf32, #tpu.memory_space<vmem>>, vector<8x576xf32>
    %c0_16 = arith.constant 0 : index
    %c576 = arith.constant 576 : index
    %30 = vector.load %arg4[%c0_16, %c576] : memref<8x2304xf32, #tpu.memory_space<vmem>>, vector<8x576xf32>
    %31 = arith.maximumf %29, %30 : vector<8x576xf32>
    %c0_17 = arith.constant 0 : index
    %c1152 = arith.constant 1152 : index
    %32 = vector.load %arg4[%c0_17, %c1152] : memref<8x2304xf32, #tpu.memory_space<vmem>>, vector<8x576xf32>
    %33 = arith.maximumf %31, %32 : vector<8x576xf32>
    %c0_18 = arith.constant 0 : index
    %c1728 = arith.constant 1728 : index
    %34 = vector.load %arg4[%c0_18, %c1728] : memref<8x2304xf32, #tpu.memory_space<vmem>>, vector<8x576xf32>
    %35 = arith.maximumf %33, %34 : vector<8x576xf32>
    %36 = arith.truncf %35 : vector<8x576xf32> to vector<8x576xbf16>
    %c0_19 = arith.constant 0 : index
    %c0_20 = arith.constant 0 : index
    %37 = vector.load %arg3[%c0_19, %c0_20] : memref<8x576xbf16, #tpu.memory_space<vmem>>, vector<8x576xbf16>
    tpu.vector_store %arg3[%c0_19, %c0_20], %36 {strides = array<i32>} : memref<8x576xbf16, #tpu.memory_space<vmem>>, vector<8x576xbf16>,
    return
  }
}

module attributes {stable_mosaic.version = 11 : i64} {
  func.func @conv2_fc_kernel(%arg0: memref<256x200xbf16, #tpu.memory_space<vmem>>, %arg1: memref<200x16xbf16, #tpu.memory_space<vmem>>, %arg2: memref<2x16xf32, #tpu.memory_space<vmem>>, %arg3: memref<16x16x120xbf16, #tpu.memory_space<vmem>>, %arg4: memref<2x120xf32, #tpu.memory_space<vmem>>, %arg5: memref<120x60xbf16, #tpu.memory_space<vmem>>, %arg6: memref<2x60xf32, #tpu.memory_space<vmem>>, %arg7: memref<60x10xbf16, #tpu.memory_space<vmem>>, %arg8: memref<1x10xf32, #tpu.memory_space<vmem>>, %arg9: memref<4x10xf32, #tpu.memory_space<vmem>>, %arg10: memref<64x16xf32, #tpu.memory_space<vmem>>) attributes {dimension_semantics = [], scalar_prefetch = 0 : i64, scratch_operands = 1 : i64, tpu.core_type = #tpu.core_type<tc>} {
    %c0 = arith.constant 0 : index
    %c0_0 = arith.constant 0 : index
    %0 = vector.load %arg0[%c0, %c0_0] : memref<256x200xbf16, #tpu.memory_space<vmem>>, vector<256x200xbf16>
    %c0_1 = arith.constant 0 : index
    %c0_2 = arith.constant 0 : index
    %1 = vector.load %arg1[%c0_1, %c0_2] : memref<200x16xbf16, #tpu.memory_space<vmem>>, vector<200x16xbf16>
    %cst = arith.constant dense<0.000000e+00> : vector<256x16xf32>
    %2 = tpu.matmul %0, %1, %cst {dimension_numbers = #tpu.dot_dimension_numbers<[1], [0], [0], [1], [0, 0, 1, 1], [], []>} : vector<256x200xbf16>, vector<200x16xbf16>, vector<256x16xf32> -> vector<256x16xf32>
    %cst_3 = arith.constant dense<0.000000e+00> : vector<16xf32>
    %3 = vector.multi_reduction <add>, %2, %cst_3 [0] : vector<256x16xf32> to vector<16xf32>
    %4 = vector.shape_cast %3 : vector<16xf32> to vector<1x16xf32>
    %cst_4 = arith.constant 3.906250e-03 : f32
    %5 = vector.broadcast %cst_4 : f32 to vector<1x16xf32>
    %6 = arith.mulf %4, %5 : vector<1x16xf32>
    %7 = arith.mulf %2, %2 : vector<256x16xf32>
    %cst_5 = arith.constant dense<0.000000e+00> : vector<16xf32>
    %8 = vector.multi_reduction <add>, %7, %cst_5 [0] : vector<256x16xf32> to vector<16xf32>
    %9 = vector.shape_cast %8 : vector<16xf32> to vector<1x16xf32>
    %cst_6 = arith.constant 3.906250e-03 : f32
    %10 = vector.broadcast %cst_6 : f32 to vector<1x16xf32>
    %11 = arith.mulf %9, %10 : vector<1x16xf32>
    %12 = arith.mulf %6, %6 : vector<1x16xf32>
    %13 = arith.subf %11, %12 : vector<1x16xf32>
    %c0_7 = arith.constant 0 : index
    %c0_8 = arith.constant 0 : index
    %14 = vector.load %arg2[%c0_7, %c0_8] : memref<2x16xf32, #tpu.memory_space<vmem>>, vector<1x16xf32>
    %cst_9 = arith.constant 9.99999974E-6 : f32
    %15 = vector.broadcast %cst_9 : f32 to vector<1x16xf32>
    %16 = arith.addf %13, %15 : vector<1x16xf32>
    %17 = math.rsqrt %16 : vector<1x16xf32>
    %18 = arith.mulf %14, %17 : vector<1x16xf32>
    %c1 = arith.constant 1 : index
    %c0_10 = arith.constant 0 : index
    %19 = vector.load %arg2[%c1, %c0_10] : memref<2x16xf32, #tpu.memory_space<vmem>>, vector<1x16xf32>
    %20 = arith.mulf %6, %18 : vector<1x16xf32>
    %21 = arith.subf %19, %20 : vector<1x16xf32>
    %22 = vector.broadcast %18 : vector<1x16xf32> to vector<256x16xf32>
    %23 = arith.mulf %2, %22 : vector<256x16xf32>
    %24 = vector.broadcast %21 : vector<1x16xf32> to vector<256x16xf32>
    %25 = arith.addf %23, %24 : vector<256x16xf32>
    %cst_11 = arith.constant 0.000000e+00 : f32
    %26 = vector.broadcast %cst_11 : f32 to vector<256x16xf32>
    %27 = arith.maximumf %25, %26 : vector<256x16xf32>
    %28 = vector.extract_strided_slice %27 {offsets = [0, 0], sizes = [64, 16], strides = [1, 1]} : vector<256x16xf32> to vector<64x16xf32>
    %29 = vector.extract_strided_slice %27 {offsets = [64, 0], sizes = [64, 16], strides = [1, 1]} : vector<256x16xf32> to vector<64x16xf32>
    %30 = arith.maximumf %28, %29 : vector<64x16xf32>
    %31 = vector.extract_strided_slice %27 {offsets = [128, 0], sizes = [64, 16], strides = [1, 1]} : vector<256x16xf32> to vector<64x16xf32>
    %32 = vector.extract_strided_slice %27 {offsets = [192, 0], sizes = [64, 16], strides = [1, 1]} : vector<256x16xf32> to vector<64x16xf32>
    %33 = arith.maximumf %31, %32 : vector<64x16xf32>
    %34 = arith.maximumf %30, %33 : vector<64x16xf32>
    %c0_12 = arith.constant 0 : index
    %c0_13 = arith.constant 0 : index
    %35 = vector.load %arg10[%c0_12, %c0_13] : memref<64x16xf32, #tpu.memory_space<vmem>>, vector<64x16xf32>
    tpu.vector_store %arg10[%c0_12, %c0_13], %34 {strides = array<i32>} : memref<64x16xf32, #tpu.memory_space<vmem>>, vector<64x16xf32>,
    %cst_14 = arith.constant 0.000000e+00 : f32
    %36 = vector.broadcast %cst_14 : f32 to vector<4x120xf32>
    %c0_15 = arith.constant 0 : index
    %c0_16 = arith.constant 0 : index
    %37 = vector.load %arg10[%c0_15, %c0_16] : memref<64x16xf32, #tpu.memory_space<vmem>>, vector<4x16xf32>
    %38 = arith.truncf %37 : vector<4x16xf32> to vector<4x16xbf16>
    %c0_17 = arith.constant 0 : index
    %c0_18 = arith.constant 0 : index
    %c0_19 = arith.constant 0 : index
    %39 = vector.load %arg3[%c0_17, %c0_18, %c0_19] : memref<16x16x120xbf16, #tpu.memory_space<vmem>>, vector<1x16x120xbf16>
    %40 = vector.shape_cast %39 : vector<1x16x120xbf16> to vector<16x120xbf16>
    %cst_20 = arith.constant dense<0.000000e+00> : vector<4x120xf32>
    %41 = tpu.matmul %38, %40, %cst_20 {dimension_numbers = #tpu.dot_dimension_numbers<[1], [0], [0], [1], [0, 0, 1, 1], [], []>} : vector<4x16xbf16>, vector<16x120xbf16>, vector<4x120xf32> -> vector<4x120xf32>
    %42 = arith.addf %36, %41 : vector<4x120xf32>
    %c4 = arith.constant 4 : index
    %c0_21 = arith.constant 0 : index
    %43 = vector.load %arg10[%c4, %c0_21] : memref<64x16xf32, #tpu.memory_space<vmem>>, vector<4x16xf32>
    %44 = arith.truncf %43 : vector<4x16xf32> to vector<4x16xbf16>
    %c1_22 = arith.constant 1 : index
    %c0_23 = arith.constant 0 : index
    %c0_24 = arith.constant 0 : index
    %45 = vector.load %arg3[%c1_22, %c0_23, %c0_24] : memref<16x16x120xbf16, #tpu.memory_space<vmem>>, vector<1x16x120xbf16>
    %46 = vector.shape_cast %45 : vector<1x16x120xbf16> to vector<16x120xbf16>
    %cst_25 = arith.constant dense<0.000000e+00> : vector<4x120xf32>
    %47 = tpu.matmul %44, %46, %cst_25 {dimension_numbers = #tpu.dot_dimension_numbers<[1], [0], [0], [1], [0, 0, 1, 1], [], []>} : vector<4x16xbf16>, vector<16x120xbf16>, vector<4x120xf32> -> vector<4x120xf32>
    %48 = arith.addf %42, %47 : vector<4x120xf32>
    %c8 = arith.constant 8 : index
    %c0_26 = arith.constant 0 : index
    %49 = vector.load %arg10[%c8, %c0_26] : memref<64x16xf32, #tpu.memory_space<vmem>>, vector<4x16xf32>
    %50 = arith.truncf %49 : vector<4x16xf32> to vector<4x16xbf16>
    %c2 = arith.constant 2 : index
    %c0_27 = arith.constant 0 : index
    %c0_28 = arith.constant 0 : index
    %51 = vector.load %arg3[%c2, %c0_27, %c0_28] : memref<16x16x120xbf16, #tpu.memory_space<vmem>>, vector<1x16x120xbf16>
    %52 = vector.shape_cast %51 : vector<1x16x120xbf16> to vector<16x120xbf16>
    %cst_29 = arith.constant dense<0.000000e+00> : vector<4x120xf32>
    %53 = tpu.matmul %50, %52, %cst_29 {dimension_numbers = #tpu.dot_dimension_numbers<[1], [0], [0], [1], [0, 0, 1, 1], [], []>} : vector<4x16xbf16>, vector<16x120xbf16>, vector<4x120xf32> -> vector<4x120xf32>
    %54 = arith.addf %48, %53 : vector<4x120xf32>
    %c12 = arith.constant 12 : index
    %c0_30 = arith.constant 0 : index
    %55 = vector.load %arg10[%c12, %c0_30] : memref<64x16xf32, #tpu.memory_space<vmem>>, vector<4x16xf32>
    %56 = arith.truncf %55 : vector<4x16xf32> to vector<4x16xbf16>
    %c3 = arith.constant 3 : index
    %c0_31 = arith.constant 0 : index
    %c0_32 = arith.constant 0 : index
    %57 = vector.load %arg3[%c3, %c0_31, %c0_32] : memref<16x16x120xbf16, #tpu.memory_space<vmem>>, vector<1x16x120xbf16>
    %58 = vector.shape_cast %57 : vector<1x16x120xbf16> to vector<16x120xbf16>
    %cst_33 = arith.constant dense<0.000000e+00> : vector<4x120xf32>
    %59 = tpu.matmul %56, %58, %cst_33 {dimension_numbers = #tpu.dot_dimension_numbers<[1], [0], [0], [1], [0, 0, 1, 1], [], []>} : vector<4x16xbf16>, vector<16x120xbf16>, vector<4x120xf32> -> vector<4x120xf32>
    %60 = arith.addf %54, %59 : vector<4x120xf32>
    %c16 = arith.constant 16 : index
    %c0_34 = arith.constant 0 : index
    %61 = vector.load %arg10[%c16, %c0_34] : memref<64x16xf32, #tpu.memory_space<vmem>>, vector<4x16xf32>
    %62 = arith.truncf %61 : vector<4x16xf32> to vector<4x16xbf16>
    %c4_35 = arith.constant 4 : index
    %c0_36 = arith.constant 0 : index
    %c0_37 = arith.constant 0 : index
    %63 = vector.load %arg3[%c4_35, %c0_36, %c0_37] : memref<16x16x120xbf16, #tpu.memory_space<vmem>>, vector<1x16x120xbf16>
    %64 = vector.shape_cast %63 : vector<1x16x120xbf16> to vector<16x120xbf16>
    %cst_38 = arith.constant dense<0.000000e+00> : vector<4x120xf32>
    %65 = tpu.matmul %62, %64, %cst_38 {dimension_numbers = #tpu.dot_dimension_numbers<[1], [0], [0], [1], [0, 0, 1, 1], [], []>} : vector<4x16xbf16>, vector<16x120xbf16>, vector<4x120xf32> -> vector<4x120xf32>
    %66 = arith.addf %60, %65 : vector<4x120xf32>
    %c20 = arith.constant 20 : index
    %c0_39 = arith.constant 0 : index
    %67 = vector.load %arg10[%c20, %c0_39] : memref<64x16xf32, #tpu.memory_space<vmem>>, vector<4x16xf32>
    %68 = arith.truncf %67 : vector<4x16xf32> to vector<4x16xbf16>
    %c5 = arith.constant 5 : index
    %c0_40 = arith.constant 0 : index
    %c0_41 = arith.constant 0 : index
    %69 = vector.load %arg3[%c5, %c0_40, %c0_41] : memref<16x16x120xbf16, #tpu.memory_space<vmem>>, vector<1x16x120xbf16>
    %70 = vector.shape_cast %69 : vector<1x16x120xbf16> to vector<16x120xbf16>
    %cst_42 = arith.constant dense<0.000000e+00> : vector<4x120xf32>
    %71 = tpu.matmul %68, %70, %cst_42 {dimension_numbers = #tpu.dot_dimension_numbers<[1], [0], [0], [1], [0, 0, 1, 1], [], []>} : vector<4x16xbf16>, vector<16x120xbf16>, vector<4x120xf32> -> vector<4x120xf32>
    %72 = arith.addf %66, %71 : vector<4x120xf32>
    %c24 = arith.constant 24 : index
    %c0_43 = arith.constant 0 : index
    %73 = vector.load %arg10[%c24, %c0_43] : memref<64x16xf32, #tpu.memory_space<vmem>>, vector<4x16xf32>
    %74 = arith.truncf %73 : vector<4x16xf32> to vector<4x16xbf16>
    %c6 = arith.constant 6 : index
    %c0_44 = arith.constant 0 : index
    %c0_45 = arith.constant 0 : index
    %75 = vector.load %arg3[%c6, %c0_44, %c0_45] : memref<16x16x120xbf16, #tpu.memory_space<vmem>>, vector<1x16x120xbf16>
    %76 = vector.shape_cast %75 : vector<1x16x120xbf16> to vector<16x120xbf16>
    %cst_46 = arith.constant dense<0.000000e+00> : vector<4x120xf32>
    %77 = tpu.matmul %74, %76, %cst_46 {dimension_numbers = #tpu.dot_dimension_numbers<[1], [0], [0], [1], [0, 0, 1, 1], [], []>} : vector<4x16xbf16>, vector<16x120xbf16>, vector<4x120xf32> -> vector<4x120xf32>
    %78 = arith.addf %72, %77 : vector<4x120xf32>
    %c28 = arith.constant 28 : index
    %c0_47 = arith.constant 0 : index
    %79 = vector.load %arg10[%c28, %c0_47] : memref<64x16xf32, #tpu.memory_space<vmem>>, vector<4x16xf32>
    %80 = arith.truncf %79 : vector<4x16xf32> to vector<4x16xbf16>
    %c7 = arith.constant 7 : index
    %c0_48 = arith.constant 0 : index
    %c0_49 = arith.constant 0 : index
    %81 = vector.load %arg3[%c7, %c0_48, %c0_49] : memref<16x16x120xbf16, #tpu.memory_space<vmem>>, vector<1x16x120xbf16>
    %82 = vector.shape_cast %81 : vector<1x16x120xbf16> to vector<16x120xbf16>
    %cst_50 = arith.constant dense<0.000000e+00> : vector<4x120xf32>
    %83 = tpu.matmul %80, %82, %cst_50 {dimension_numbers = #tpu.dot_dimension_numbers<[1], [0], [0], [1], [0, 0, 1, 1], [], []>} : vector<4x16xbf16>, vector<16x120xbf16>, vector<4x120xf32> -> vector<4x120xf32>
    %84 = arith.addf %78, %83 : vector<4x120xf32>
    %c32 = arith.constant 32 : index
    %c0_51 = arith.constant 0 : index
    %85 = vector.load %arg10[%c32, %c0_51] : memref<64x16xf32, #tpu.memory_space<vmem>>, vector<4x16xf32>
    %86 = arith.truncf %85 : vector<4x16xf32> to vector<4x16xbf16>
    %c8_52 = arith.constant 8 : index
    %c0_53 = arith.constant 0 : index
    %c0_54 = arith.constant 0 : index
    %87 = vector.load %arg3[%c8_52, %c0_53, %c0_54] : memref<16x16x120xbf16, #tpu.memory_space<vmem>>, vector<1x16x120xbf16>
    %88 = vector.shape_cast %87 : vector<1x16x120xbf16> to vector<16x120xbf16>
    %cst_55 = arith.constant dense<0.000000e+00> : vector<4x120xf32>
    %89 = tpu.matmul %86, %88, %cst_55 {dimension_numbers = #tpu.dot_dimension_numbers<[1], [0], [0], [1], [0, 0, 1, 1], [], []>} : vector<4x16xbf16>, vector<16x120xbf16>, vector<4x120xf32> -> vector<4x120xf32>
    %90 = arith.addf %84, %89 : vector<4x120xf32>
    %c36 = arith.constant 36 : index
    %c0_56 = arith.constant 0 : index
    %91 = vector.load %arg10[%c36, %c0_56] : memref<64x16xf32, #tpu.memory_space<vmem>>, vector<4x16xf32>
    %92 = arith.truncf %91 : vector<4x16xf32> to vector<4x16xbf16>
    %c9 = arith.constant 9 : index
    %c0_57 = arith.constant 0 : index
    %c0_58 = arith.constant 0 : index
    %93 = vector.load %arg3[%c9, %c0_57, %c0_58] : memref<16x16x120xbf16, #tpu.memory_space<vmem>>, vector<1x16x120xbf16>
    %94 = vector.shape_cast %93 : vector<1x16x120xbf16> to vector<16x120xbf16>
    %cst_59 = arith.constant dense<0.000000e+00> : vector<4x120xf32>
    %95 = tpu.matmul %92, %94, %cst_59 {dimension_numbers = #tpu.dot_dimension_numbers<[1], [0], [0], [1], [0, 0, 1, 1], [], []>} : vector<4x16xbf16>, vector<16x120xbf16>, vector<4x120xf32> -> vector<4x120xf32>
    %96 = arith.addf %90, %95 : vector<4x120xf32>
    %c40 = arith.constant 40 : index
    %c0_60 = arith.constant 0 : index
    %97 = vector.load %arg10[%c40, %c0_60] : memref<64x16xf32, #tpu.memory_space<vmem>>, vector<4x16xf32>
    %98 = arith.truncf %97 : vector<4x16xf32> to vector<4x16xbf16>
    %c10 = arith.constant 10 : index
    %c0_61 = arith.constant 0 : index
    %c0_62 = arith.constant 0 : index
    %99 = vector.load %arg3[%c10, %c0_61, %c0_62] : memref<16x16x120xbf16, #tpu.memory_space<vmem>>, vector<1x16x120xbf16>
    %100 = vector.shape_cast %99 : vector<1x16x120xbf16> to vector<16x120xbf16>
    %cst_63 = arith.constant dense<0.000000e+00> : vector<4x120xf32>
    %101 = tpu.matmul %98, %100, %cst_63 {dimension_numbers = #tpu.dot_dimension_numbers<[1], [0], [0], [1], [0, 0, 1, 1], [], []>} : vector<4x16xbf16>, vector<16x120xbf16>, vector<4x120xf32> -> vector<4x120xf32>
    %102 = arith.addf %96, %101 : vector<4x120xf32>
    %c44 = arith.constant 44 : index
    %c0_64 = arith.constant 0 : index
    %103 = vector.load %arg10[%c44, %c0_64] : memref<64x16xf32, #tpu.memory_space<vmem>>, vector<4x16xf32>
    %104 = arith.truncf %103 : vector<4x16xf32> to vector<4x16xbf16>
    %c11 = arith.constant 11 : index
    %c0_65 = arith.constant 0 : index
    %c0_66 = arith.constant 0 : index
    %105 = vector.load %arg3[%c11, %c0_65, %c0_66] : memref<16x16x120xbf16, #tpu.memory_space<vmem>>, vector<1x16x120xbf16>
    %106 = vector.shape_cast %105 : vector<1x16x120xbf16> to vector<16x120xbf16>
    %cst_67 = arith.constant dense<0.000000e+00> : vector<4x120xf32>
    %107 = tpu.matmul %104, %106, %cst_67 {dimension_numbers = #tpu.dot_dimension_numbers<[1], [0], [0], [1], [0, 0, 1, 1], [], []>} : vector<4x16xbf16>, vector<16x120xbf16>, vector<4x120xf32> -> vector<4x120xf32>
    %108 = arith.addf %102, %107 : vector<4x120xf32>
    %c48 = arith.constant 48 : index
    %c0_68 = arith.constant 0 : index
    %109 = vector.load %arg10[%c48, %c0_68] : memref<64x16xf32, #tpu.memory_space<vmem>>, vector<4x16xf32>
    %110 = arith.truncf %109 : vector<4x16xf32> to vector<4x16xbf16>
    %c12_69 = arith.constant 12 : index
    %c0_70 = arith.constant 0 : index
    %c0_71 = arith.constant 0 : index
    %111 = vector.load %arg3[%c12_69, %c0_70, %c0_71] : memref<16x16x120xbf16, #tpu.memory_space<vmem>>, vector<1x16x120xbf16>
    %112 = vector.shape_cast %111 : vector<1x16x120xbf16> to vector<16x120xbf16>
    %cst_72 = arith.constant dense<0.000000e+00> : vector<4x120xf32>
    %113 = tpu.matmul %110, %112, %cst_72 {dimension_numbers = #tpu.dot_dimension_numbers<[1], [0], [0], [1], [0, 0, 1, 1], [], []>} : vector<4x16xbf16>, vector<16x120xbf16>, vector<4x120xf32> -> vector<4x120xf32>
    %114 = arith.addf %108, %113 : vector<4x120xf32>
    %c52 = arith.constant 52 : index
    %c0_73 = arith.constant 0 : index
    %115 = vector.load %arg10[%c52, %c0_73] : memref<64x16xf32, #tpu.memory_space<vmem>>, vector<4x16xf32>
    %116 = arith.truncf %115 : vector<4x16xf32> to vector<4x16xbf16>
    %c13 = arith.constant 13 : index
    %c0_74 = arith.constant 0 : index
    %c0_75 = arith.constant 0 : index
    %117 = vector.load %arg3[%c13, %c0_74, %c0_75] : memref<16x16x120xbf16, #tpu.memory_space<vmem>>, vector<1x16x120xbf16>
    %118 = vector.shape_cast %117 : vector<1x16x120xbf16> to vector<16x120xbf16>
    %cst_76 = arith.constant dense<0.000000e+00> : vector<4x120xf32>
    %119 = tpu.matmul %116, %118, %cst_76 {dimension_numbers = #tpu.dot_dimension_numbers<[1], [0], [0], [1], [0, 0, 1, 1], [], []>} : vector<4x16xbf16>, vector<16x120xbf16>, vector<4x120xf32> -> vector<4x120xf32>
    %120 = arith.addf %114, %119 : vector<4x120xf32>
    %c56 = arith.constant 56 : index
    %c0_77 = arith.constant 0 : index
    %121 = vector.load %arg10[%c56, %c0_77] : memref<64x16xf32, #tpu.memory_space<vmem>>, vector<4x16xf32>
    %122 = arith.truncf %121 : vector<4x16xf32> to vector<4x16xbf16>
    %c14 = arith.constant 14 : index
    %c0_78 = arith.constant 0 : index
    %c0_79 = arith.constant 0 : index
    %123 = vector.load %arg3[%c14, %c0_78, %c0_79] : memref<16x16x120xbf16, #tpu.memory_space<vmem>>, vector<1x16x120xbf16>
    %124 = vector.shape_cast %123 : vector<1x16x120xbf16> to vector<16x120xbf16>
    %cst_80 = arith.constant dense<0.000000e+00> : vector<4x120xf32>
    %125 = tpu.matmul %122, %124, %cst_80 {dimension_numbers = #tpu.dot_dimension_numbers<[1], [0], [0], [1], [0, 0, 1, 1], [], []>} : vector<4x16xbf16>, vector<16x120xbf16>, vector<4x120xf32> -> vector<4x120xf32>
    %126 = arith.addf %120, %125 : vector<4x120xf32>
    %c60 = arith.constant 60 : index
    %c0_81 = arith.constant 0 : index
    %127 = vector.load %arg10[%c60, %c0_81] : memref<64x16xf32, #tpu.memory_space<vmem>>, vector<4x16xf32>
    %128 = arith.truncf %127 : vector<4x16xf32> to vector<4x16xbf16>
    %c15 = arith.constant 15 : index
    %c0_82 = arith.constant 0 : index
    %c0_83 = arith.constant 0 : index
    %129 = vector.load %arg3[%c15, %c0_82, %c0_83] : memref<16x16x120xbf16, #tpu.memory_space<vmem>>, vector<1x16x120xbf16>
    %130 = vector.shape_cast %129 : vector<1x16x120xbf16> to vector<16x120xbf16>
    %cst_84 = arith.constant dense<0.000000e+00> : vector<4x120xf32>
    %131 = tpu.matmul %128, %130, %cst_84 {dimension_numbers = #tpu.dot_dimension_numbers<[1], [0], [0], [1], [0, 0, 1, 1], [], []>} : vector<4x16xbf16>, vector<16x120xbf16>, vector<4x120xf32> -> vector<4x120xf32>
    %132 = arith.addf %126, %131 : vector<4x120xf32>
    %cst_85 = arith.constant dense<0.000000e+00> : vector<120xf32>
    %133 = vector.multi_reduction <add>, %132, %cst_85 [0] : vector<4x120xf32> to vector<120xf32>
    %134 = vector.shape_cast %133 : vector<120xf32> to vector<1x120xf32>
    %cst_86 = arith.constant 4.000000e+00 : f32
    %135 = vector.broadcast %cst_86 : f32 to vector<1x120xf32>
    %136 = arith.divf %134, %135 : vector<1x120xf32>
    %137 = arith.mulf %132, %132 : vector<4x120xf32>
    %cst_87 = arith.constant dense<0.000000e+00> : vector<120xf32>
    %138 = vector.multi_reduction <add>, %137, %cst_87 [0] : vector<4x120xf32> to vector<120xf32>
    %139 = vector.shape_cast %138 : vector<120xf32> to vector<1x120xf32>
    %cst_88 = arith.constant 4.000000e+00 : f32
    %140 = vector.broadcast %cst_88 : f32 to vector<1x120xf32>
    %141 = arith.divf %139, %140 : vector<1x120xf32>
    %142 = arith.mulf %136, %136 : vector<1x120xf32>
    %143 = arith.subf %141, %142 : vector<1x120xf32>
    %c0_89 = arith.constant 0 : index
    %c0_90 = arith.constant 0 : index
    %144 = vector.load %arg4[%c0_89, %c0_90] : memref<2x120xf32, #tpu.memory_space<vmem>>, vector<1x120xf32>
    %cst_91 = arith.constant 9.99999974E-6 : f32
    %145 = vector.broadcast %cst_91 : f32 to vector<1x120xf32>
    %146 = arith.addf %143, %145 : vector<1x120xf32>
    %147 = math.rsqrt %146 : vector<1x120xf32>
    %148 = arith.mulf %144, %147 : vector<1x120xf32>
    %c1_92 = arith.constant 1 : index
    %c0_93 = arith.constant 0 : index
    %149 = vector.load %arg4[%c1_92, %c0_93] : memref<2x120xf32, #tpu.memory_space<vmem>>, vector<1x120xf32>
    %150 = arith.mulf %136, %148 : vector<1x120xf32>
    %151 = arith.subf %149, %150 : vector<1x120xf32>
    %152 = vector.broadcast %148 : vector<1x120xf32> to vector<4x120xf32>
    %153 = arith.mulf %132, %152 : vector<4x120xf32>
    %154 = vector.broadcast %151 : vector<1x120xf32> to vector<4x120xf32>
    %155 = arith.addf %153, %154 : vector<4x120xf32>
    %cst_94 = arith.constant 0.000000e+00 : f32
    %156 = vector.broadcast %cst_94 : f32 to vector<4x120xf32>
    %157 = arith.maximumf %155, %156 : vector<4x120xf32>
    %158 = arith.truncf %157 : vector<4x120xf32> to vector<4x120xbf16>
    %c0_95 = arith.constant 0 : index
    %c0_96 = arith.constant 0 : index
    %159 = vector.load %arg5[%c0_95, %c0_96] : memref<120x60xbf16, #tpu.memory_space<vmem>>, vector<120x60xbf16>
    %cst_97 = arith.constant dense<0.000000e+00> : vector<4x60xf32>
    %160 = tpu.matmul %158, %159, %cst_97 {dimension_numbers = #tpu.dot_dimension_numbers<[1], [0], [0], [1], [0, 0, 1, 1], [], []>} : vector<4x120xbf16>, vector<120x60xbf16>, vector<4x60xf32> -> vector<4x60xf32>
    %cst_98 = arith.constant dense<0.000000e+00> : vector<60xf32>
    %161 = vector.multi_reduction <add>, %160, %cst_98 [0] : vector<4x60xf32> to vector<60xf32>
    %162 = vector.shape_cast %161 : vector<60xf32> to vector<1x60xf32>
    %cst_99 = arith.constant 4.000000e+00 : f32
    %163 = vector.broadcast %cst_99 : f32 to vector<1x60xf32>
    %164 = arith.divf %162, %163 : vector<1x60xf32>
    %165 = arith.mulf %160, %160 : vector<4x60xf32>
    %cst_100 = arith.constant dense<0.000000e+00> : vector<60xf32>
    %166 = vector.multi_reduction <add>, %165, %cst_100 [0] : vector<4x60xf32> to vector<60xf32>
    %167 = vector.shape_cast %166 : vector<60xf32> to vector<1x60xf32>
    %cst_101 = arith.constant 4.000000e+00 : f32
    %168 = vector.broadcast %cst_101 : f32 to vector<1x60xf32>
    %169 = arith.divf %167, %168 : vector<1x60xf32>
    %170 = arith.mulf %164, %164 : vector<1x60xf32>
    %171 = arith.subf %169, %170 : vector<1x60xf32>
    %c0_102 = arith.constant 0 : index
    %c0_103 = arith.constant 0 : index
    %172 = vector.load %arg6[%c0_102, %c0_103] : memref<2x60xf32, #tpu.memory_space<vmem>>, vector<1x60xf32>
    %cst_104 = arith.constant 9.99999974E-6 : f32
    %173 = vector.broadcast %cst_104 : f32 to vector<1x60xf32>
    %174 = arith.addf %171, %173 : vector<1x60xf32>
    %175 = math.rsqrt %174 : vector<1x60xf32>
    %176 = arith.mulf %172, %175 : vector<1x60xf32>
    %c1_105 = arith.constant 1 : index
    %c0_106 = arith.constant 0 : index
    %177 = vector.load %arg6[%c1_105, %c0_106] : memref<2x60xf32, #tpu.memory_space<vmem>>, vector<1x60xf32>
    %178 = arith.mulf %164, %176 : vector<1x60xf32>
    %179 = arith.subf %177, %178 : vector<1x60xf32>
    %180 = vector.broadcast %176 : vector<1x60xf32> to vector<4x60xf32>
    %181 = arith.mulf %160, %180 : vector<4x60xf32>
    %182 = vector.broadcast %179 : vector<1x60xf32> to vector<4x60xf32>
    %183 = arith.addf %181, %182 : vector<4x60xf32>
    %cst_107 = arith.constant 0.000000e+00 : f32
    %184 = vector.broadcast %cst_107 : f32 to vector<4x60xf32>
    %185 = arith.maximumf %183, %184 : vector<4x60xf32>
    %186 = arith.truncf %185 : vector<4x60xf32> to vector<4x60xbf16>
    %c0_108 = arith.constant 0 : index
    %c0_109 = arith.constant 0 : index
    %187 = vector.load %arg7[%c0_108, %c0_109] : memref<60x10xbf16, #tpu.memory_space<vmem>>, vector<60x10xbf16>
    %cst_110 = arith.constant dense<0.000000e+00> : vector<4x10xf32>
    %188 = tpu.matmul %186, %187, %cst_110 {dimension_numbers = #tpu.dot_dimension_numbers<[1], [0], [0], [1], [0, 0, 1, 1], [], []>} : vector<4x60xbf16>, vector<60x10xbf16>, vector<4x10xf32> -> vector<4x10xf32>
    %c0_111 = arith.constant 0 : index
    %c0_112 = arith.constant 0 : index
    %189 = vector.load %arg8[%c0_111, %c0_112] : memref<1x10xf32, #tpu.memory_space<vmem>>, vector<1x10xf32>
    %190 = vector.broadcast %189 : vector<1x10xf32> to vector<4x10xf32>
    %191 = arith.addf %188, %190 : vector<4x10xf32>
    %c0_113 = arith.constant 0 : index
    %c0_114 = arith.constant 0 : index
    %192 = vector.load %arg9[%c0_113, %c0_114] : memref<4x10xf32, #tpu.memory_space<vmem>>, vector<4x10xf32>
    tpu.vector_store %arg9[%c0_113, %c0_114], %191 {strides = array<i32>} : memref<4x10xf32, #tpu.memory_space<vmem>>, vector<4x10xf32>,
    return
  }
}

</mosaic_0001>

<llo_original>
// kernel: network_forward.2
$region0: #{network_forward.2}
  #allocation0 [shape = 'u32[]', space=smem, size = 0x4, offset = 0x4, fixed_abs, tag = 'smem constant byte address 0x4 - core index']
  #allocation1 [shape = 'u32[72,128]{1,0:T(1,128)}', space=vmem, size = 0x9000, scoped, tag = 'internal scratch']
  #allocation2 [shape = 'f32[8,2304]{1,0:T(8,128)}', space=vmem, size = 0x12000, scoped, tag = 'scratch operand']
  %s0 = inlined_call_operand.vmem [shape: bf16[32,2304], index: 0, kind: input, shape index: {}]
  %s1 = inlined_call_operand.vmem [shape: bf16[8,32], index: 1, kind: input, shape index: {}]
  %s2 = inlined_call_operand.vmem [shape: f32[8,2], index: 2, kind: input, shape index: {}]
  %s3 = inlined_call_operand.vmem [shape: bf16[8,576], index: 3, kind: output, shape index: {}]
  %s4 = sld [smem:[#allocation0]]
  $region22: #{network_forward.2} parent=0
    _
  %s6 = ssub.s32 1, %s4
  %s7 = scalar_select 0, %s6, %s4
  // Predicated region
  $region2: #{network_forward.2} parent=0 // pred_check
    _
  $region3: #{network_forward.2} parent=0 // pred_check_branch
    %9 = sbr.rel (0) target = $region5
  $region4: #{network_forward.2} parent=0 // pred_region
    _
  $region5: #{network_forward.2} parent=0 // pred_fallthru
    _
  // Predicated region
  $region6: #{network_forward.2} parent=0 // pred_check
    _
  $region7: #{network_forward.2} parent=0 // pred_check_branch
    %11 = sbr.rel (0) target = $region9
  $region8: #{network_forward.2} parent=0 // pred_region
    _
  $region9: #{network_forward.2} parent=0 // pred_fallthru
    _
  // Predicated region
  $region10: #{network_forward.2} parent=0 // pred_check
    _
  $region11: #{network_forward.2} parent=0 // pred_check_branch
    %13 = sbr.rel (0) target = $region13
  $region12: #{network_forward.2} parent=0 // pred_region
    _
  $region13: #{network_forward.2} parent=0 // pred_fallthru
    _
  %v15 = vld [vmem:[%s1] sm:$0xf]
  %v16 = vld [vmem:[%s0] sm:$0xff]
  %v17 = vld [vmem:[%s0 + $0x8] sm:$0xff]
  %v18 = vld [vmem:[%s0 + $0x10] sm:$0xff]
  %v19 = vld [vmem:[%s0 + $0x18] sm:$0xff]
  %v20 = vld [vmem:[%s0 + $0x20] sm:$0xff]
  %v21 = vld [vmem:[%s0 + $0x28] sm:$0xff]
  %v22 = vld [vmem:[%s0 + $0x30] sm:$0xff]
  %v23 = vld [vmem:[%s0 + $0x38] sm:$0xff]
  %v24 = vld [vmem:[%s0 + $0x40] sm:$0xff]
  %v25 = vld [vmem:[%s0 + $0x48] sm:$0xff]
  %v26 = vld [vmem:[%s0 + $0x50] sm:$0xff]
  %v27 = vld [vmem:[%s0 + $0x58] sm:$0xff]
  %v28 = vld [vmem:[%s0 + $0x60] sm:$0xff]
  %v29 = vld [vmem:[%s0 + $0x68] sm:$0xff]
  %v30 = vld [vmem:[%s0 + $0x70] sm:$0xff]
  %v31 = vld [vmem:[%s0 + $0x78] sm:$0xff]
  %v32 = vld [vmem:[%s0 + $0x80] sm:$0xff]
  %v33 = vld [vmem:[%s0 + $0x88] sm:$0xff]
  %v34 = vld [vmem:[%s0 + $0x90] sm:$0xff]
  %v35 = vld [vmem:[%s0 + $0x98] sm:$0xff]
  %v36 = vld [vmem:[%s0 + $0xa0] sm:$0xff]
  %v37 = vld [vmem:[%s0 + $0xa8] sm:$0xff]
  %v38 = vld [vmem:[%s0 + $0xb0] sm:$0xff]
  %v39 = vld [vmem:[%s0 + $0xb8] sm:$0xff]
  %v40 = vld [vmem:[%s0 + $0xc0] sm:$0xff]
  %v41 = vld [vmem:[%s0 + $0xc8] sm:$0xff]
  %v42 = vld [vmem:[%s0 + $0xd0] sm:$0xff]
  %v43 = vld [vmem:[%s0 + $0xd8] sm:$0xff]
  %v44 = vld [vmem:[%s0 + $0xe0] sm:$0xff]
  %v45 = vld [vmem:[%s0 + $0xe8] sm:$0xff]
  %v46 = vld [vmem:[%s0 + $0xf0] sm:$0xff]
  %v47 = vld [vmem:[%s0 + $0xf8] sm:$0xff]
  %v48 = vld [vmem:[%s0 + $0x100] sm:$0xff]
  %v49 = vld [vmem:[%s0 + $0x108] sm:$0xff]
  %v50 = vld [vmem:[%s0 + $0x110] sm:$0xff]
  %v51 = vld [vmem:[%s0 + $0x118] sm:$0xff]
  %v88 = vunpack.c.l.b16 %v16
  %v89 = vunpack.c.h.b16 %v16
  %v90 = vunpack.c.l.b16 %v17
  %v91 = vunpack.c.h.b16 %v17
  %v92 = vunpack.c.l.b16 %v18
  %v93 = vunpack.c.h.b16 %v18
  %v94 = vunpack.c.l.b16 %v19
  %v95 = vunpack.c.h.b16 %v19
  %v96 = vunpack.c.l.b16 %v20
  %v97 = vunpack.c.h.b16 %v20
  %v98 = vunpack.c.l.b16 %v21
  %v99 = vunpack.c.h.b16 %v21
  %v100 = vunpack.c.l.b16 %v22
  %v101 = vunpack.c.h.b16 %v22
  %v102 = vunpack.c.l.b16 %v23
  %v103 = vunpack.c.h.b16 %v23
  %v104 = vunpack.c.l.b16 %v24
  %v105 = vunpack.c.h.b16 %v24
  %v106 = vunpack.c.l.b16 %v25
  %v107 = vunpack.c.h.b16 %v25
  %v108 = vunpack.c.l.b16 %v26
  %v109 = vunpack.c.h.b16 %v26
  %v110 = vunpack.c.l.b16 %v27
  %v111 = vunpack.c.h.b16 %v27
  %v112 = vunpack.c.l.b16 %v28
  %v113 = vunpack.c.h.b16 %v28
  %v114 = vunpack.c.l.b16 %v29
  %v115 = vunpack.c.h.b16 %v29
  %v116 = vunpack.c.l.b16 %v30
  %v117 = vunpack.c.h.b16 %v30
  %v118 = vunpack.c.l.b16 %v31
  %v119 = vunpack.c.h.b16 %v31
  %v120 = vunpack.c.l.b16 %v32
  %v121 = vunpack.c.h.b16 %v32
  %v122 = vunpack.c.l.b16 %v33
  %v123 = vunpack.c.h.b16 %v33
  %v124 = vunpack.c.l.b16 %v34
  %v125 = vunpack.c.h.b16 %v34
  %v126 = vunpack.c.l.b16 %v35
  %v127 = vunpack.c.h.b16 %v35
  %v128 = vunpack.c.l.b16 %v36
  %v129 = vunpack.c.h.b16 %v36
  %v130 = vunpack.c.l.b16 %v37
  %v131 = vunpack.c.h.b16 %v37
  %v132 = vunpack.c.l.b16 %v38
  %v133 = vunpack.c.h.b16 %v38
  %v134 = vunpack.c.l.b16 %v39
  %v135 = vunpack.c.h.b16 %v39
  %v136 = vunpack.c.l.b16 %v40
  %v137 = vunpack.c.h.b16 %v40
  %v138 = vunpack.c.l.b16 %v41
  %v139 = vunpack.c.h.b16 %v41
  %v140 = vunpack.c.l.b16 %v42
  %v141 = vunpack.c.h.b16 %v42
  %v142 = vunpack.c.l.b16 %v43
  %v143 = vunpack.c.h.b16 %v43
  %v144 = vunpack.c.l.b16 %v44
  %v145 = vunpack.c.h.b16 %v44
  %v146 = vunpack.c.l.b16 %v45
  %v147 = vunpack.c.h.b16 %v45
  %v148 = vunpack.c.l.b16 %v46
  %v149 = vunpack.c.h.b16 %v46
  %v150 = vunpack.c.l.b16 %v47
  %v151 = vunpack.c.h.b16 %v47
  %v152 = vunpack.c.l.b16 %v48
  %v153 = vunpack.c.h.b16 %v48
  %v154 = vunpack.c.l.b16 %v49
  %v155 = vunpack.c.h.b16 %v49
  %v156 = vunpack.c.l.b16 %v50
  %v157 = vunpack.c.h.b16 %v50
  %v158 = vunpack.c.l.b16 %v51
  %v159 = vunpack.c.h.b16 %v51
  %v160 = vpack.c.b16 %v106, %v88
  %v161 = vpack.c.b16 %v107, %v89
  %v162 = vpack.c.b16 %v108, %v90
  %v163 = vpack.c.b16 %v109, %v91
  %v164 = vpack.c.b16 %v110, %v92
  %v165 = vpack.c.b16 %v111, %v93
  %v166 = vpack.c.b16 %v112, %v94
  %v167 = vpack.c.b16 %v113, %v95
  %v168 = vpack.c.b16 %v114, %v96
  %v169 = vpack.c.b16 %v115, %v97
  %v170 = vpack.c.b16 %v116, %v98
  %v171 = vpack.c.b16 %v117, %v99
  %v172 = vpack.c.b16 %v118, %v100
  %v173 = vpack.c.b16 %v119, %v101
  %v174 = vpack.c.b16 %v120, %v102
  %v175 = vpack.c.b16 %v121, %v103
  %v176 = vpack.c.b16 %v122, %v104
  %v177 = vpack.c.b16 %v123, %v105
  %v178 = vpack.c.b16 %v142, %v124
  %v179 = vpack.c.b16 %v143, %v125
  %v180 = vpack.c.b16 %v144, %v126
  %v181 = vpack.c.b16 %v145, %v127
  %v182 = vpack.c.b16 %v146, %v128
  %v183 = vpack.c.b16 %v147, %v129
  %v184 = vpack.c.b16 %v148, %v130
  %v185 = vpack.c.b16 %v149, %v131
  %v186 = vpack.c.b16 %v150, %v132
  %v187 = vpack.c.b16 %v151, %v133
  %v188 = vpack.c.b16 %v152, %v134
  %v189 = vpack.c.b16 %v153, %v135
  %v190 = vpack.c.b16 %v154, %v136
  %v191 = vpack.c.b16 %v155, %v137
  %v192 = vpack.c.b16 %v156, %v138
  %v193 = vpack.c.b16 %v157, %v139
  %v194 = vpack.c.b16 %v158, %v140
  %v195 = vpack.c.b16 %v159, %v141
  %vm232 = vcmask 261120
  %v234 = vsel %vm232, %v15, 0
  %236 = vmatpush.bf16.msra.mxu0 0
  %237 = vmatpush.bf16.msra.mxu0 0
  %238 = vmatpush.bf16.msra.mxu0 0
  %239 = vmatpush.bf16.msra.mxu0 0
  %240 = vmatpush.bf16.msra.mxu0 0
  %241 = vmatpush.bf16.msra.mxu0 0
  %242 = vmatpush.bf16.msra.mxu0 %v178
  %243 = vmatpush.bf16.msra.mxu0 %v160
  %244 = vmatmul.bf16.gmra.mxu0 %v234
  %v245 = vpop.f32.mrf.mxu0
  %v246 = vadd.f32 0.0, %v245
  %v247 = vpop.f32.mrf.mxu0
  %248 = vdwg.mxu0
  %249 = vmatpush.bf16.msra.mxu0 0
  %250 = vmatpush.bf16.msra.mxu0 0
  %251 = vmatpush.bf16.msra.mxu0 0
  %252 = vmatpush.bf16.msra.mxu0 0
  %253 = vmatpush.bf16.msra.mxu0 0
  %254 = vmatpush.bf16.msra.mxu0 0
  %255 = vmatpush.bf16.msra.mxu0 %v179
  %256 = vmatpush.bf16.msra.mxu0 %v161
  %257 = vmatmul.bf16.gmra.mxu0 %v234
  %v258 = vpop.f32.mrf.mxu0
  %v259 = vadd.f32 0.0, %v258
  %v260 = vpop.f32.mrf.mxu0
  %261 = vdwg.mxu0
  %262 = vmatpush.bf16.msra.mxu0 0
  %263 = vmatpush.bf16.msra.mxu0 0
  %264 = vmatpush.bf16.msra.mxu0 0
  %265 = vmatpush.bf16.msra.mxu0 0
  %266 = vmatpush.bf16.msra.mxu0 0
  %267 = vmatpush.bf16.msra.mxu0 0
  %268 = vmatpush.bf16.msra.mxu0 %v180
  %269 = vmatpush.bf16.msra.mxu0 %v162
  %270 = vmatmul.bf16.gmra.mxu0 %v234
  %v271 = vpop.f32.mrf.mxu0
  %v272 = vadd.f32 0.0, %v271
  %v273 = vpop.f32.mrf.mxu0
  %274 = vdwg.mxu0
  %275 = vmatpush.bf16.msra.mxu0 0
  %276 = vmatpush.bf16.msra.mxu0 0
  %277 = vmatpush.bf16.msra.mxu0 0
  %278 = vmatpush.bf16.msra.mxu0 0
  %279 = vmatpush.bf16.msra.mxu0 0
  %280 = vmatpush.bf16.msra.mxu0 0
  %281 = vmatpush.bf16.msra.mxu0 %v181
  %282 = vmatpush.bf16.msra.mxu0 %v163
  %283 = vmatmul.bf16.gmra.mxu0 %v234
  %v284 = vpop.f32.mrf.mxu0
  %v285 = vadd.f32 0.0, %v284
  %v286 = vpop.f32.mrf.mxu0
  %287 = vdwg.mxu0
  %288 = vmatpush.bf16.msra.mxu0 0
  %289 = vmatpush.bf16.msra.mxu0 0
  %290 = vmatpush.bf16.msra.mxu0 0
  %291 = vmatpush.bf16.msra.mxu0 0
  %292 = vmatpush.bf16.msra.mxu0 0
  %293 = vmatpush.bf16.msra.mxu0 0
  %294 = vmatpush.bf16.msra.mxu0 %v182
  %295 = vmatpush.bf16.msra.mxu0 %v164
  %296 = vmatmul.bf16.gmra.mxu0 %v234
  %v297 = vpop.f32.mrf.mxu0
  %v298 = vadd.f32 0.0, %v297
  %v299 = vpop.f32.mrf.mxu0
  %300 = vdwg.mxu0
  %301 = vmatpush.bf16.msra.mxu0 0
  %302 = vmatpush.bf16.msra.mxu0 0
  %303 = vmatpush.bf16.msra.mxu0 0
  %304 = vmatpush.bf16.msra.mxu0 0
  %305 = vmatpush.bf16.msra.mxu0 0
  %306 = vmatpush.bf16.msra.mxu0 0
  %307 = vmatpush.bf16.msra.mxu0 %v183
  %308 = vmatpush.bf16.msra.mxu0 %v165
  %309 = vmatmul.bf16.gmra.mxu0 %v234
  %v310 = vpop.f32.mrf.mxu0
  %v311 = vadd.f32 0.0, %v310
  %v312 = vpop.f32.mrf.mxu0
  %313 = vdwg.mxu0
  %314 = vmatpush.bf16.msra.mxu0 0
  %315 = vmatpush.bf16.msra.mxu0 0
  %316 = vmatpush.bf16.msra.mxu0 0
  %317 = vmatpush.bf16.msra.mxu0 0
  %318 = vmatpush.bf16.msra.mxu0 0
  %319 = vmatpush.bf16.msra.mxu0 0
  %320 = vmatpush.bf16.msra.mxu0 %v184
  %321 = vmatpush.bf16.msra.mxu0 %v166
  %322 = vmatmul.bf16.gmra.mxu0 %v234
  %v323 = vpop.f32.mrf.mxu0
  %v324 = vadd.f32 0.0, %v323
  %v325 = vpop.f32.mrf.mxu0
  %326 = vdwg.mxu0
  %327 = vmatpush.bf16.msra.mxu0 0
  %328 = vmatpush.bf16.msra.mxu0 0
  %329 = vmatpush.bf16.msra.mxu0 0
  %330 = vmatpush.bf16.msra.mxu0 0
  %331 = vmatpush.bf16.msra.mxu0 0
  %332 = vmatpush.bf16.msra.mxu0 0
  %333 = vmatpush.bf16.msra.mxu0 %v185
  %334 = vmatpush.bf16.msra.mxu0 %v167
  %335 = vmatmul.bf16.gmra.mxu0 %v234
  %v336 = vpop.f32.mrf.mxu0
  %v337 = vadd.f32 0.0, %v336
  %v338 = vpop.f32.mrf.mxu0
  %339 = vdwg.mxu0
  %340 = vmatpush.bf16.msra.mxu0 0
  %341 = vmatpush.bf16.msra.mxu0 0
  %342 = vmatpush.bf16.msra.mxu0 0
  %343 = vmatpush.bf16.msra.mxu0 0
  %344 = vmatpush.bf16.msra.mxu0 0
  %345 = vmatpush.bf16.msra.mxu0 0
  %346 = vmatpush.bf16.msra.mxu0 %v186
  %347 = vmatpush.bf16.msra.mxu0 %v168
  %348 = vmatmul.bf16.gmra.mxu0 %v234
  %v349 = vpop.f32.mrf.mxu0
  %v350 = vadd.f32 0.0, %v349
  %v351 = vpop.f32.mrf.mxu0
  %352 = vdwg.mxu0
  %353 = vmatpush.bf16.msra.mxu0 0
  %354 = vmatpush.bf16.msra.mxu0 0
  %355 = vmatpush.bf16.msra.mxu0 0
  %356 = vmatpush.bf16.msra.mxu0 0
  %357 = vmatpush.bf16.msra.mxu0 0
  %358 = vmatpush.bf16.msra.mxu0 0
  %359 = vmatpush.bf16.msra.mxu0 %v187
  %360 = vmatpush.bf16.msra.mxu0 %v169
  %361 = vmatmul.bf16.gmra.mxu0 %v234
  %v362 = vpop.f32.mrf.mxu0
  %v363 = vadd.f32 0.0, %v362
  %v364 = vpop.f32.mrf.mxu0
  %365 = vdwg.mxu0
  %366 = vmatpush.bf16.msra.mxu0 0
  %367 = vmatpush.bf16.msra.mxu0 0
  %368 = vmatpush.bf16.msra.mxu0 0
  %369 = vmatpush.bf16.msra.mxu0 0
  %370 = vmatpush.bf16.msra.mxu0 0
  %371 = vmatpush.bf16.msra.mxu0 0
  %372 = vmatpush.bf16.msra.mxu0 %v188
  %373 = vmatpush.bf16.msra.mxu0 %v170
  %374 = vmatmul.bf16.gmra.mxu0 %v234
  %v375 = vpop.f32.mrf.mxu0
  %v376 = vadd.f32 0.0, %v375
  %v377 = vpop.f32.mrf.mxu0
  %378 = vdwg.mxu0
  %379 = vmatpush.bf16.msra.mxu0 0
  %380 = vmatpush.bf16.msra.mxu0 0
  %381 = vmatpush.bf16.msra.mxu0 0
  %382 = vmatpush.bf16.msra.mxu0 0
  %383 = vmatpush.bf16.msra.mxu0 0
  %384 = vmatpush.bf16.msra.mxu0 0
  %385 = vmatpush.bf16.msra.mxu0 %v189
  %386 = vmatpush.bf16.msra.mxu0 %v171
  %387 = vmatmul.bf16.gmra.mxu0 %v234
  %v388 = vpop.f32.mrf.mxu0
  %v389 = vadd.f32 0.0, %v388
  %v390 = vpop.f32.mrf.mxu0
  %391 = vdwg.mxu0
  %392 = vmatpush.bf16.msra.mxu0 0
  %393 = vmatpush.bf16.msra.mxu0 0
  %394 = vmatpush.bf16.msra.mxu0 0
  %395 = vmatpush.bf16.msra.mxu0 0
  %396 = vmatpush.bf16.msra.mxu0 0
  %397 = vmatpush.bf16.msra.mxu0 0
  %398 = vmatpush.bf16.msra.mxu0 %v190
  %399 = vmatpush.bf16.msra.mxu0 %v172
  %400 = vmatmul.bf16.gmra.mxu0 %v234
  %v401 = vpop.f32.mrf.mxu0
  %v402 = vadd.f32 0.0, %v401
  %v403 = vpop.f32.mrf.mxu0
  %404 = vdwg.mxu0
  %405 = vmatpush.bf16.msra.mxu0 0
  %406 = vmatpush.bf16.msra.mxu0 0
  %407 = vmatpush.bf16.msra.mxu0 0
  %408 = vmatpush.bf16.msra.mxu0 0
  %409 = vmatpush.bf16.msra.mxu0 0
  %410 = vmatpush.bf16.msra.mxu0 0
  %411 = vmatpush.bf16.msra.mxu0 %v191
  %412 = vmatpush.bf16.msra.mxu0 %v173
  %413 = vmatmul.bf16.gmra.mxu0 %v234
  %v414 = vpop.f32.mrf.mxu0
  %v415 = vadd.f32 0.0, %v414
  %v416 = vpop.f32.mrf.mxu0
  %417 = vdwg.mxu0
  %418 = vmatpush.bf16.msra.mxu0 0
  %419 = vmatpush.bf16.msra.mxu0 0
  %420 = vmatpush.bf16.msra.mxu0 0
  %421 = vmatpush.bf16.msra.mxu0 0
  %422 = vmatpush.bf16.msra.mxu0 0
  %423 = vmatpush.bf16.msra.mxu0 0
  %424 = vmatpush.bf16.msra.mxu0 %v192
  %425 = vmatpush.bf16.msra.mxu0 %v174
  %426 = vmatmul.bf16.gmra.mxu0 %v234
  %v427 = vpop.f32.mrf.mxu0
  %v428 = vadd.f32 0.0, %v427
  %v429 = vpop.f32.mrf.mxu0
  %430 = vdwg.mxu0
  %431 = vmatpush.bf16.msra.mxu0 0
  %432 = vmatpush.bf16.msra.mxu0 0
  %433 = vmatpush.bf16.msra.mxu0 0
  %434 = vmatpush.bf16.msra.mxu0 0
  %435 = vmatpush.bf16.msra.mxu0 0
  %436 = vmatpush.bf16.msra.mxu0 0
  %437 = vmatpush.bf16.msra.mxu0 %v193
  %438 = vmatpush.bf16.msra.mxu0 %v175
  %439 = vmatmul.bf16.gmra.mxu0 %v234
  %v440 = vpop.f32.mrf.mxu0
  %v441 = vadd.f32 0.0, %v440
  %v442 = vpop.f32.mrf.mxu0
  %443 = vdwg.mxu0
  %444 = vmatpush.bf16.msra.mxu0 0
  %445 = vmatpush.bf16.msra.mxu0 0
  %446 = vmatpush.bf16.msra.mxu0 0
  %447 = vmatpush.bf16.msra.mxu0 0
  %448 = vmatpush.bf16.msra.mxu0 0
  %449 = vmatpush.bf16.msra.mxu0 0
  %450 = vmatpush.bf16.msra.mxu0 %v194
  %451 = vmatpush.bf16.msra.mxu0 %v176
  %452 = vmatmul.bf16.gmra.mxu0 %v234
  %v453 = vpop.f32.mrf.mxu0
  %v454 = vadd.f32 0.0, %v453
  %v455 = vpop.f32.mrf.mxu0
  %456 = vdwg.mxu0
  %457 = vmatpush.bf16.msra.mxu0 0
  %458 = vmatpush.bf16.msra.mxu0 0
  %459 = vmatpush.bf16.msra.mxu0 0
  %460 = vmatpush.bf16.msra.mxu0 0
  %461 = vmatpush.bf16.msra.mxu0 0
  %462 = vmatpush.bf16.msra.mxu0 0
  %463 = vmatpush.bf16.msra.mxu0 %v195
  %464 = vmatpush.bf16.msra.mxu0 %v177
  %465 = vmatmul.bf16.gmra.mxu0 %v234
  %v466 = vpop.f32.mrf.mxu0
  %v467 = vadd.f32 0.0, %v466
  %v468 = vpop.f32.mrf.mxu0
  %469 = vdwg.mxu0
  %v470 = vadd.f32 %v246, %v259
  %v471 = vadd.f32 %v470, %v272
  %v472 = vadd.f32 %v471, %v285
  %v473 = vadd.f32 %v472, %v298
  %v474 = vadd.f32 %v473, %v311
  %v475 = vadd.f32 %v474, %v324
  %v476 = vadd.f32 %v475, %v337
  %v477 = vadd.f32 %v476, %v350
  %v478 = vadd.f32 %v477, %v363
  %v479 = vadd.f32 %v478, %v376
  %v480 = vadd.f32 %v479, %v389
  %v481 = vadd.f32 %v480, %v402
  %v482 = vadd.f32 %v481, %v415
  %v483 = vadd.f32 %v482, %v428
  %v484 = vadd.f32 %v483, %v441
  %v485 = vadd.f32 %v484, %v454
  %v486 = vadd.f32 %v485, %v467
  %487 = vadd.xlane.f32.xlu0 %v486
  %v488 = vpop.xlane.xlu0 %487
  %v489 = vmul.f32 %v488, 0.00043402778
  %v490 = vmul.f32 %v246, %v246
  %v491 = vmul.f32 %v259, %v259
  %v492 = vmul.f32 %v272, %v272
  %v493 = vmul.f32 %v285, %v285
  %v494 = vmul.f32 %v298, %v298
  %v495 = vmul.f32 %v311, %v311
  %v496 = vmul.f32 %v324, %v324
  %v497 = vmul.f32 %v337, %v337
  %v498 = vmul.f32 %v350, %v350
  %v499 = vmul.f32 %v363, %v363
  %v500 = vmul.f32 %v376, %v376
  %v501 = vmul.f32 %v389, %v389
  %v502 = vmul.f32 %v402, %v402
  %v503 = vmul.f32 %v415, %v415
  %v504 = vmul.f32 %v428, %v428
  %v505 = vmul.f32 %v441, %v441
  %v506 = vmul.f32 %v454, %v454
  %v507 = vmul.f32 %v467, %v467
  %v508 = vadd.f32 %v490, %v491
  %v509 = vadd.f32 %v508, %v492
  %v510 = vadd.f32 %v509, %v493
  %v511 = vadd.f32 %v510, %v494
  %v512 = vadd.f32 %v511, %v495
  %v513 = vadd.f32 %v512, %v496
  %v514 = vadd.f32 %v513, %v497
  %v515 = vadd.f32 %v514, %v498
  %v516 = vadd.f32 %v515, %v499
  %v517 = vadd.f32 %v516, %v500
  %v518 = vadd.f32 %v517, %v501
  %v519 = vadd.f32 %v518, %v502
  %v520 = vadd.f32 %v519, %v503
  %v521 = vadd.f32 %v520, %v504
  %v522 = vadd.f32 %v521, %v505
  %v523 = vadd.f32 %v522, %v506
  %v524 = vadd.f32 %v523, %v507
  %525 = vadd.xlane.f32.xlu0 %v524
  %v526 = vpop.xlane.xlu0 %525
  %v527 = vmul.f32 %v526, 0.00043402778
  %v528 = vmul.f32 %v489, %v489
  %v529 = vsub.f32 %v527, %v528
  %v530 = vld [vmem:[%s2] sm:$0xff]
  %v531 = vadd.f32 %v529, 1e-05
  %v532 = vrsqrt.pop %v531
  %v533 = vmul.f32 %v532, %v531
  %v534 = vmul.f32 %v533, %v532
  %v535 = vmul.f32 0.5, %v534
  %v536 = vsub.f32 1.5, %v535
  %v537 = vmul.f32 %v532, %v536
  %vm538 = vweird.f32 %v531
  %vm539 = vweird.f32 %v532
  %vm540 = vmor %vm538, %vm539
  %v541 = vsel %vm540, %v532, %v537
  %v542 = vmul.f32 %v530, %v541
  %v543 = vmul.f32 %v489, %v542
  %545 = vrot.lane.b32.xlu0 %v543, 1
  %v546 = vpop.permute.xlu0 %545
  %v548 = vsub.f32 %v530, %v546
  %550 = vset.pattern.permute.xlu0 0
  %551 = vperm.xlu0 %550, %v542
  %v552 = vpop.permute.xlu0 %551
  %v554 = vmul.f32 %v246, %v552
  %v555 = vmul.f32 %v259, %v552
  %v556 = vmul.f32 %v272, %v552
  %v557 = vmul.f32 %v285, %v552
  %v558 = vmul.f32 %v298, %v552
  %v559 = vmul.f32 %v311, %v552
  %v560 = vmul.f32 %v324, %v552
  %v561 = vmul.f32 %v337, %v552
  %v562 = vmul.f32 %v350, %v552
  %v563 = vmul.f32 %v363, %v552
  %v564 = vmul.f32 %v376, %v552
  %v565 = vmul.f32 %v389, %v552
  %v566 = vmul.f32 %v402, %v552
  %v567 = vmul.f32 %v415, %v552
  %v568 = vmul.f32 %v428, %v552
  %v569 = vmul.f32 %v441, %v552
  %v570 = vmul.f32 %v454, %v552
  %v571 = vmul.f32 %v467, %v552
  %573 = vset.pattern.permute.xlu0 1
  %574 = vperm.xlu0 %573, %v548
  %v575 = vpop.permute.xlu0 %574
  %v577 = vadd.f32 %v554, %v575
  %v578 = vadd.f32 %v555, %v575
  %v579 = vadd.f32 %v556, %v575
  %v580 = vadd.f32 %v557, %v575
  %v581 = vadd.f32 %v558, %v575
  %v582 = vadd.f32 %v559, %v575
  %v583 = vadd.f32 %v560, %v575
  %v584 = vadd.f32 %v561, %v575
  %v585 = vadd.f32 %v562, %v575
  %v586 = vadd.f32 %v563, %v575
  %v587 = vadd.f32 %v564, %v575
  %v588 = vadd.f32 %v565, %v575
  %v589 = vadd.f32 %v566, %v575
  %v590 = vadd.f32 %v567, %v575
  %v591 = vadd.f32 %v568, %v575
  %v592 = vadd.f32 %v569, %v575
  %v593 = vadd.f32 %v570, %v575
  %v594 = vadd.f32 %v571, %v575
  %v595 = vmax.f32 %v577, 0.0
  %v596 = vmax.f32 %v578, 0.0
  %v597 = vmax.f32 %v579, 0.0
  %v598 = vmax.f32 %v580, 0.0
  %v599 = vmax.f32 %v581, 0.0
  %v600 = vmax.f32 %v582, 0.0
  %v601 = vmax.f32 %v583, 0.0
  %v602 = vmax.f32 %v584, 0.0
  %v603 = vmax.f32 %v585, 0.0
  %v604 = vmax.f32 %v586, 0.0
  %v605 = vmax.f32 %v587, 0.0
  %v606 = vmax.f32 %v588, 0.0
  %v607 = vmax.f32 %v589, 0.0
  %v608 = vmax.f32 %v590, 0.0
  %v609 = vmax.f32 %v591, 0.0
  %v610 = vmax.f32 %v592, 0.0
  %v611 = vmax.f32 %v593, 0.0
  %v612 = vmax.f32 %v594, 0.0
  %613 = vst [vmem:[#allocation2] sm:$0xff] %v595
  %614 = vst [vmem:[#allocation2 + $0x8] sm:$0xff] %v596
  %615 = vst [vmem:[#allocation2 + $0x10] sm:$0xff] %v597
  %616 = vst [vmem:[#allocation2 + $0x18] sm:$0xff] %v598
  %617 = vst [vmem:[#allocation2 + $0x20] sm:$0xff] %v599
  %618 = vst [vmem:[#allocation2 + $0x28] sm:$0xff] %v600
  %619 = vst [vmem:[#allocation2 + $0x30] sm:$0xff] %v601
  %620 = vst [vmem:[#allocation2 + $0x38] sm:$0xff] %v602
  %621 = vst [vmem:[#allocation2 + $0x40] sm:$0xff] %v603
  %622 = vst [vmem:[#allocation2 + $0x48] sm:$0xff] %v604
  %623 = vst [vmem:[#allocation2 + $0x50] sm:$0xff] %v605
  %624 = vst [vmem:[#allocation2 + $0x58] sm:$0xff] %v606
  %625 = vst [vmem:[#allocation2 + $0x60] sm:$0xff] %v607
  %626 = vst [vmem:[#allocation2 + $0x68] sm:$0xff] %v608
  %627 = vst [vmem:[#allocation2 + $0x70] sm:$0xff] %v609
  %628 = vst [vmem:[#allocation2 + $0x78] sm:$0xff] %v610
  %629 = vst [vmem:[#allocation2 + $0x80] sm:$0xff] %v611
  %630 = vst [vmem:[#allocation2 + $0x88] sm:$0xff] %v612
  %v631 = vld [vmem:[#allocation2] sm:$0xff]
  %v632 = vld [vmem:[#allocation2 + $0x8] sm:$0xff]
  %v633 = vld [vmem:[#allocation2 + $0x10] sm:$0xff]
  %v634 = vld [vmem:[#allocation2 + $0x18] sm:$0xff]
  %v635 = vld [vmem:[#allocation2 + $0x20] sm:$0xff]
  %v636 = vld [vmem:[#allocation2 + $0x28] sm:$0xff]
  %v637 = vld [vmem:[#allocation2 + $0x30] sm:$0xff]
  %v638 = vld [vmem:[#allocation2 + $0x38] sm:$0xff]
  %v639 = vld [vmem:[#allocation2 + $0x40] sm:$0xff]
  %645 = vrot.lane.b32.xlu0 %v635, 64
  %v646 = vpop.permute.xlu0 %645
  %647 = vrot.lane.b32.xlu0 %v636, 64
  %v648 = vpop.permute.xlu0 %647
  %649 = vrot.lane.b32.xlu0 %v637, 64
  %v650 = vpop.permute.xlu0 %649
  %651 = vrot.lane.b32.xlu0 %v638, 64
  %v652 = vpop.permute.xlu0 %651
  %653 = vrot.lane.b32.xlu0 %v639, 64
  %v654 = vpop.permute.xlu0 %653
  %vm655 = vcmask 523264
  %v656 = vsel %vm655, %v646, %v648
  %v657 = vsel %vm655, %v648, %v650
  %v658 = vsel %vm655, %v650, %v652
  %v659 = vsel %vm655, %v652, %v654
  %v665 = vmax.f32 %v631, %v656
  %v666 = vmax.f32 %v632, %v657
  %v667 = vmax.f32 %v633, %v658
  %v668 = vmax.f32 %v634, %v659
  %v669 = vmax.f32 %v635, %v654
  %v670 = vld [vmem:[#allocation2 + $0x48] sm:$0xff]
  %v671 = vld [vmem:[#allocation2 + $0x50] sm:$0xff]
  %v672 = vld [vmem:[#allocation2 + $0x58] sm:$0xff]
  %v673 = vld [vmem:[#allocation2 + $0x60] sm:$0xff]
  %v674 = vld [vmem:[#allocation2 + $0x68] sm:$0xff]
  %v675 = vmax.f32 %v665, %v670
  %v676 = vmax.f32 %v666, %v671
  %v677 = vmax.f32 %v667, %v672
  %v678 = vmax.f32 %v668, %v673
  %v679 = vmax.f32 %v669, %v674
  %v680 = vld [vmem:[#allocation2 + $0x68] sm:$0xff]
  %v681 = vld [vmem:[#allocation2 + $0x70] sm:$0xff]
  %v682 = vld [vmem:[#allocation2 + $0x78] sm:$0xff]
  %v683 = vld [vmem:[#allocation2 + $0x80] sm:$0xff]
  %v684 = vld [vmem:[#allocation2 + $0x88] sm:$0xff]
  %690 = vrot.lane.b32.xlu0 %v680, 64
  %v691 = vpop.permute.xlu0 %690
  %692 = vrot.lane.b32.xlu0 %v681, 64
  %v693 = vpop.permute.xlu0 %692
  %694 = vrot.lane.b32.xlu0 %v682, 64
  %v695 = vpop.permute.xlu0 %694
  %696 = vrot.lane.b32.xlu0 %v683, 64
  %v697 = vpop.permute.xlu0 %696
  %698 = vrot.lane.b32.xlu0 %v684, 64
  %v699 = vpop.permute.xlu0 %698
  %v700 = vsel %vm655, %v691, %v693
  %v701 = vsel %vm655, %v693, %v695
  %v702 = vsel %vm655, %v695, %v697
  %v703 = vsel %vm655, %v697, %v699
  %v709 = vmax.f32 %v675, %v700
  %v710 = vmax.f32 %v676, %v701
  %v711 = vmax.f32 %v677, %v702
  %v712 = vmax.f32 %v678, %v703
  %v713 = vmax.f32 %v679, %v699
  %v714 = vpack.c.bf16 %v710, %v709
  %v715 = vpack.c.bf16 %v712, %v711
  %v716 = vpack.c.bf16 %v713, %v713
  %717 = vst [vmem:[%s3] sm:$0xff] %v714
  %718 = vst [vmem:[%s3 + $0x8] sm:$0xff] %v715
  %vm719 = vcmask 519168
  %720 = vst.msk [vmem:[%s3 + $0x10] sm:$0xf] %vm719, %v716
  // Predicated region
  $region14: #{network_forward.2} parent=0 // pred_check
    _
  $region15: #{network_forward.2} parent=0 // pred_check_branch
    %722 = sbr.rel (0) target = $region17
  $region16: #{network_forward.2} parent=0 // pred_region
    _
  $region17: #{network_forward.2} parent=0 // pred_fallthru
    _
  // Predicated region
  $region18: #{network_forward.2} parent=0 // pred_check
    _
  $region19: #{network_forward.2} parent=0 // pred_check_branch
    %724 = sbr.rel (0) target = $region21
  $region20: #{network_forward.2} parent=0 // pred_region
    _
  $region21: #{network_forward.2} parent=0 // pred_fallthru
    _

// kernel: network_forward.3
$region0: #{network_forward.3}
  #allocation0 [shape = 'u32[]', space=smem, size = 0x4, offset = 0x4, fixed_abs, tag = 'smem constant byte address 0x4 - core index']
  #allocation1 [shape = 'u32[72,128]{1,0:T(1,128)}', space=vmem, size = 0x9000, scoped, tag = 'internal scratch']
  #allocation2 [shape = 'f32[64,16]{1,0:T(8,128)}', space=vmem, size = 0x8000, scoped, tag = 'scratch operand']
  %s0 = inlined_call_operand.vmem [shape: bf16[256,200], index: 0, kind: input, shape index: {}]
  %s1 = inlined_call_operand.vmem [shape: bf16[200,16], index: 1, kind: input, shape index: {}]
  %s2 = inlined_call_operand.vmem [shape: f32[2,16], index: 2, kind: input, shape index: {}]
  %s3 = inlined_call_operand.vmem [shape: bf16[16,16,120], index: 3, kind: input, shape index: {}]
  %s4 = inlined_call_operand.vmem [shape: f32[2,120], index: 4, kind: input, shape index: {}]
  %s5 = inlined_call_operand.vmem [shape: bf16[120,60], index: 5, kind: input, shape index: {}]
  %s6 = inlined_call_operand.vmem [shape: f32[2,60], index: 6, kind: input, shape index: {}]
  %s7 = inlined_call_operand.vmem [shape: bf16[60,10], index: 7, kind: input, shape index: {}]
  %s8 = inlined_call_operand.vmem [shape: f32[1,10], index: 8, kind: input, shape index: {}]
  %s9 = inlined_call_operand.hbm [shape: f32[4,10], index: 9, kind: output, shape index: {}]
  %s10 = sld [smem:[#allocation0]]
  $region46: #{network_forward.3} parent=0
    _
  %s12 = ssub.s32 1, %s10
  %s13 = scalar_select 0, %s12, %s10
  $region1: #{network_forward.3} parent=0
    #allocation3 [shape = 'u8[2048]{0}', space=vmem, size = 0x800, scoped, tag = 'output window, operand 0, single buffered']
    #allocation4 [shape = 's32[1]{0}', space=sflag, size = 0x4, scoped, tag = 'scoped memory for network_forward.3']
    %14 = vsyncpa [#allocation4], 0
    // Predicated region
    $region2: #{network_forward.3} parent=1 // pred_check
      _
    $region3: #{network_forward.3} parent=1 // pred_check_branch
      %16 = sbr.rel (0) target = $region5
    $region4: #{network_forward.3} parent=1 // pred_region
      _
    $region5: #{network_forward.3} parent=1 // pred_fallthru
      _
    // Predicated region
    $region6: #{network_forward.3} parent=1 // pred_check
      _
    $region7: #{network_forward.3} parent=1 // pred_check_branch
      %18 = sbr.rel (0) target = $region9
    $region8: #{network_forward.3} parent=1 // pred_region
      _
    $region9: #{network_forward.3} parent=1 // pred_fallthru
      _
    // Predicated region
    $region10: #{network_forward.3} parent=1 // pred_check
      _
    $region11: #{network_forward.3} parent=1 // pred_check_branch
      %20 = sbr.rel (0) target = $region13
    $region12: #{network_forward.3} parent=1 // pred_region
      _
    $region13: #{network_forward.3} parent=1 // pred_fallthru
      _
    // Predicated region
    $region14: #{network_forward.3} parent=1 // pred_check
      _
    $region15: #{network_forward.3} parent=1 // pred_check_branch
      %22 = sbr.rel (0) target = $region17
    $region16: #{network_forward.3} parent=1 // pred_region
      _
    $region17: #{network_forward.3} parent=1 // pred_fallthru
      _
    // Predicated region
    $region18: #{network_forward.3} parent=1 // pred_check
      _
    $region19: #{network_forward.3} parent=1 // pred_check_branch
      %24 = sbr.rel (0) target = $region21
    $region20: #{network_forward.3} parent=1 // pred_region
      _
    $region21: #{network_forward.3} parent=1 // pred_fallthru
      _
    // Predicated region
    $region22: #{network_forward.3} parent=1 // pred_check
      _
    $region23: #{network_forward.3} parent=1 // pred_check_branch
      %26 = sbr.rel (0) target = $region25
    $region24: #{network_forward.3} parent=1 // pred_region
      _
    $region25: #{network_forward.3} parent=1 // pred_fallthru
      _
    // Predicated region
    $region26: #{network_forward.3} parent=1 // pred_check
      _
    $region27: #{network_forward.3} parent=1 // pred_check_branch
      %28 = sbr.rel (0) target = $region29
    $region28: #{network_forward.3} parent=1 // pred_region
      _
    $region29: #{network_forward.3} parent=1 // pred_fallthru
      _
    // Predicated region
    $region30: #{network_forward.3} parent=1 // pred_check
      _
    $region31: #{network_forward.3} parent=1 // pred_check_branch
      %30 = sbr.rel (0) target = $region33
    $region32: #{network_forward.3} parent=1 // pred_region
      _
    $region33: #{network_forward.3} parent=1 // pred_fallthru
      _
    // Predicated region
    $region34: #{network_forward.3} parent=1 // pred_check
      _
    $region35: #{network_forward.3} parent=1 // pred_check_branch
      %32 = sbr.rel (0) target = $region37
    $region36: #{network_forward.3} parent=1 // pred_region
      _
    $region37: #{network_forward.3} parent=1 // pred_fallthru
      _
    %v34 = vld [vmem:[%s0] sm:$0xff]
    %v35 = vld [vmem:[%s0 + $0x8] sm:$0xff]
    %v36 = vld [vmem:[%s0 + $0x10] sm:$0xff]
    %v37 = vld [vmem:[%s0 + $0x18] sm:$0xff]
    %v38 = vld [vmem:[%s0 + $0x20] sm:$0xff]
    %v39 = vld [vmem:[%s0 + $0x28] sm:$0xff]
    %v40 = vld [vmem:[%s0 + $0x30] sm:$0xff]
    %v41 = vld [vmem:[%s0 + $0x38] sm:$0xff]
    %v42 = vld [vmem:[%s0 + $0x40] sm:$0xff]
    %v43 = vld [vmem:[%s0 + $0x48] sm:$0xff]
    %v44 = vld [vmem:[%s0 + $0x50] sm:$0xff]
    %v45 = vld [vmem:[%s0 + $0x58] sm:$0xff]
    %v46 = vld [vmem:[%s0 + $0x60] sm:$0xff]
    %v47 = vld [vmem:[%s0 + $0x68] sm:$0xff]
    %v48 = vld [vmem:[%s0 + $0x70] sm:$0xff]
    %v49 = vld [vmem:[%s0 + $0x78] sm:$0xff]
    %v50 = vld [vmem:[%s0 + $0x80] sm:$0xff]
    %v51 = vld [vmem:[%s0 + $0x88] sm:$0xff]
    %v52 = vld [vmem:[%s0 + $0x90] sm:$0xff]
    %v53 = vld [vmem:[%s0 + $0x98] sm:$0xff]
    %v54 = vld [vmem:[%s0 + $0xa0] sm:$0xff]
    %v55 = vld [vmem:[%s0 + $0xa8] sm:$0xff]
    %v56 = vld [vmem:[%s0 + $0xb0] sm:$0xff]
    %v57 = vld [vmem:[%s0 + $0xb8] sm:$0xff]
    %v58 = vld [vmem:[%s0 + $0xc0] sm:$0xff]
    %v59 = vld [vmem:[%s0 + $0xc8] sm:$0xff]
    %v60 = vld [vmem:[%s0 + $0xd0] sm:$0xff]
    %v61 = vld [vmem:[%s0 + $0xd8] sm:$0xff]
    %v62 = vld [vmem:[%s0 + $0xe0] sm:$0xff]
    %v63 = vld [vmem:[%s0 + $0xe8] sm:$0xff]
    %v64 = vld [vmem:[%s0 + $0xf0] sm:$0xff]
    %v65 = vld [vmem:[%s0 + $0xf8] sm:$0xff]
    %v66 = vld [vmem:[%s1] sm:$0xf]
    %v67 = vld [vmem:[%s1 + $0x4] sm:$0xf]
    %v68 = vld [vmem:[%s1 + $0x8] sm:$0xf]
    %v69 = vld [vmem:[%s1 + $0xc] sm:$0xf]
    %v70 = vld [vmem:[%s1 + $0x10] sm:$0xf]
    %v71 = vld [vmem:[%s1 + $0x14] sm:$0xf]
    %v72 = vld [vmem:[%s1 + $0x18] sm:$0xf]
    %v73 = vld [vmem:[%s1 + $0x1c] sm:$0xf]
    %v74 = vld [vmem:[%s1 + $0x20] sm:$0xf]
    %v75 = vld [vmem:[%s1 + $0x24] sm:$0xf]
    %v76 = vld [vmem:[%s1 + $0x28] sm:$0xf]
    %v77 = vld [vmem:[%s1 + $0x2c] sm:$0xf]
    %v78 = vld [vmem:[%s1 + $0x30] sm:$0xf]
    %v79 = vld [vmem:[%s1 + $0x34] sm:$0xf]
    %v80 = vld [vmem:[%s1 + $0x38] sm:$0xf]
    %v81 = vld [vmem:[%s1 + $0x3c] sm:$0xf]
    %v82 = vld [vmem:[%s1 + $0x40] sm:$0xf]
    %v83 = vld [vmem:[%s1 + $0x44] sm:$0xf]
    %v84 = vld [vmem:[%s1 + $0x48] sm:$0xf]
    %v85 = vld [vmem:[%s1 + $0x4c] sm:$0xf]
    %v86 = vld [vmem:[%s1 + $0x50] sm:$0xf]
    %v87 = vld [vmem:[%s1 + $0x54] sm:$0xf]
    %v88 = vld [vmem:[%s1 + $0x58] sm:$0xf]
    %v89 = vld [vmem:[%s1 + $0x5c] sm:$0xf]
    %v90 = vld [vmem:[%s1 + $0x60] sm:$0xf]
    %v123 = vunpack.c.l.b16 %v34
    %v124 = vunpack.c.h.b16 %v34
    %v125 = vunpack.c.l.b16 %v35
    %v126 = vunpack.c.h.b16 %v35
    %v127 = vunpack.c.l.b16 %v36
    %v128 = vunpack.c.h.b16 %v36
    %v129 = vunpack.c.l.b16 %v37
    %v130 = vunpack.c.h.b16 %v37
    %v131 = vunpack.c.l.b16 %v38
    %v132 = vunpack.c.h.b16 %v38
    %v133 = vunpack.c.l.b16 %v39
    %v134 = vunpack.c.h.b16 %v39
    %v135 = vunpack.c.l.b16 %v40
    %v136 = vunpack.c.h.b16 %v40
    %v137 = vunpack.c.l.b16 %v41
    %v138 = vunpack.c.h.b16 %v41
    %v139 = vunpack.c.l.b16 %v42
    %v140 = vunpack.c.h.b16 %v42
    %v141 = vunpack.c.l.b16 %v43
    %v142 = vunpack.c.h.b16 %v43
    %v143 = vunpack.c.l.b16 %v44
    %v144 = vunpack.c.h.b16 %v44
    %v145 = vunpack.c.l.b16 %v45
    %v146 = vunpack.c.h.b16 %v45
    %v147 = vunpack.c.l.b16 %v46
    %v148 = vunpack.c.h.b16 %v46
    %v149 = vunpack.c.l.b16 %v47
    %v150 = vunpack.c.h.b16 %v47
    %v151 = vunpack.c.l.b16 %v48
    %v152 = vunpack.c.h.b16 %v48
    %v153 = vunpack.c.l.b16 %v49
    %v154 = vunpack.c.h.b16 %v49
    %v155 = vunpack.c.l.b16 %v50
    %v156 = vunpack.c.h.b16 %v50
    %v157 = vunpack.c.l.b16 %v51
    %v158 = vunpack.c.h.b16 %v51
    %v159 = vunpack.c.l.b16 %v52
    %v160 = vunpack.c.h.b16 %v52
    %v161 = vunpack.c.l.b16 %v53
    %v162 = vunpack.c.h.b16 %v53
    %v163 = vunpack.c.l.b16 %v54
    %v164 = vunpack.c.h.b16 %v54
    %v165 = vunpack.c.l.b16 %v55
    %v166 = vunpack.c.h.b16 %v55
    %v167 = vunpack.c.l.b16 %v56
    %v168 = vunpack.c.h.b16 %v56
    %v169 = vunpack.c.l.b16 %v57
    %v170 = vunpack.c.h.b16 %v57
    %v171 = vunpack.c.l.b16 %v58
    %v172 = vunpack.c.h.b16 %v58
    %v173 = vunpack.c.l.b16 %v59
    %v174 = vunpack.c.h.b16 %v59
    %v175 = vunpack.c.l.b16 %v60
    %v176 = vunpack.c.h.b16 %v60
    %v177 = vunpack.c.l.b16 %v61
    %v178 = vunpack.c.h.b16 %v61
    %v179 = vunpack.c.l.b16 %v62
    %v180 = vunpack.c.h.b16 %v62
    %v181 = vunpack.c.l.b16 %v63
    %v182 = vunpack.c.h.b16 %v63
    %v183 = vunpack.c.l.b16 %v64
    %v184 = vunpack.c.h.b16 %v64
    %v185 = vunpack.c.l.b16 %v65
    %v186 = vunpack.c.h.b16 %v65
    %v187 = vpack.c.b16 %v125, %v123
    %v188 = vpack.c.b16 %v126, %v124
    %v189 = vpack.c.b16 %v129, %v127
    %v190 = vpack.c.b16 %v130, %v128
    %v191 = vpack.c.b16 %v133, %v131
    %v192 = vpack.c.b16 %v134, %v132
    %v193 = vpack.c.b16 %v137, %v135
    %v194 = vpack.c.b16 %v138, %v136
    %v195 = vpack.c.b16 %v141, %v139
    %v196 = vpack.c.b16 %v142, %v140
    %v197 = vpack.c.b16 %v145, %v143
    %v198 = vpack.c.b16 %v146, %v144
    %v199 = vpack.c.b16 %v149, %v147
    %v200 = vpack.c.b16 %v150, %v148
    %v201 = vpack.c.b16 %v153, %v151
    %v202 = vpack.c.b16 %v154, %v152
    %v203 = vpack.c.b16 %v157, %v155
    %v204 = vpack.c.b16 %v158, %v156
    %v205 = vpack.c.b16 %v161, %v159
    %v206 = vpack.c.b16 %v162, %v160
    %v207 = vpack.c.b16 %v165, %v163
    %v208 = vpack.c.b16 %v166, %v164
    %v209 = vpack.c.b16 %v169, %v167
    %v210 = vpack.c.b16 %v170, %v168
    %v211 = vpack.c.b16 %v173, %v171
    %v212 = vpack.c.b16 %v174, %v172
    %v213 = vpack.c.b16 %v177, %v175
    %v214 = vpack.c.b16 %v178, %v176
    %v215 = vpack.c.b16 %v181, %v179
    %v216 = vpack.c.b16 %v182, %v180
    %v217 = vpack.c.b16 %v185, %v183
    %v218 = vpack.c.b16 %v186, %v184
    %v260 = vunpack.c.l.b16 %v66
    %v261 = vunpack.c.l.b16 %v67
    %v262 = vunpack.c.l.b16 %v68
    %v263 = vunpack.c.l.b16 %v69
    %v264 = vunpack.c.l.b16 %v70
    %v265 = vunpack.c.l.b16 %v71
    %v266 = vunpack.c.l.b16 %v72
    %v267 = vunpack.c.l.b16 %v73
    %v268 = vunpack.c.l.b16 %v74
    %v269 = vunpack.c.l.b16 %v75
    %v270 = vunpack.c.l.b16 %v76
    %v271 = vunpack.c.l.b16 %v77
    %v272 = vunpack.c.l.b16 %v78
    %v273 = vunpack.c.l.b16 %v79
    %v274 = vunpack.c.l.b16 %v80
    %v275 = vunpack.c.l.b16 %v81
    %v276 = vunpack.c.l.b16 %v82
    %v277 = vunpack.c.l.b16 %v83
    %v278 = vunpack.c.l.b16 %v84
    %v279 = vunpack.c.l.b16 %v85
    %v280 = vunpack.c.l.b16 %v86
    %v281 = vunpack.c.l.b16 %v87
    %v282 = vunpack.c.l.b16 %v88
    %v283 = vunpack.c.l.b16 %v89
    %v284 = vunpack.c.l.b16 %v90
    %v285 = vpack.c.b16 %v261, %v260
    %v286 = vpack.c.b16 %v263, %v262
    %v287 = vpack.c.b16 %v265, %v264
    %v288 = vpack.c.b16 %v267, %v266
    %v289 = vpack.c.b16 %v269, %v268
    %v290 = vpack.c.b16 %v271, %v270
    %v291 = vpack.c.b16 %v273, %v272
    %v292 = vpack.c.b16 %v275, %v274
    %v293 = vpack.c.b16 %v277, %v276
    %v294 = vpack.c.b16 %v279, %v278
    %v295 = vpack.c.b16 %v281, %v280
    %v296 = vpack.c.b16 %v283, %v282
    %v297 = vpack.c.b16 %v284, %v284
    %vm310 = vcmask 588800
    %v312 = vsel %vm310, %v188, 0
    %v315 = vsel %vm310, %v190, 0
    %v318 = vsel %vm310, %v192, 0
    %v321 = vsel %vm310, %v194, 0
    %v324 = vsel %vm310, %v196, 0
    %v327 = vsel %vm310, %v198, 0
    %v330 = vsel %vm310, %v200, 0
    %v333 = vsel %vm310, %v202, 0
    %v336 = vsel %vm310, %v204, 0
    %v339 = vsel %vm310, %v206, 0
    %v342 = vsel %vm310, %v208, 0
    %v345 = vsel %vm310, %v210, 0
    %v348 = vsel %vm310, %v212, 0
    %v351 = vsel %vm310, %v214, 0
    %v354 = vsel %vm310, %v216, 0
    %v357 = vsel %vm310, %v218, 0
    %vm359 = vcmask 1043456
    %v361 = vsel %vm359, %v297, 0
    %363 = vmatpush.bf16.msra.mxu0 %v292
    %364 = vmatpush.bf16.msra.mxu0 %v291
    %365 = vmatpush.bf16.msra.mxu0 %v290
    %366 = vmatpush.bf16.msra.mxu0 %v289
    %367 = vmatpush.bf16.msra.mxu0 %v288
    %368 = vmatpush.bf16.msra.mxu0 %v287
    %369 = vmatpush.bf16.msra.mxu0 %v286
    %370 = vmatpush.bf16.msra.mxu0 %v285
    %371 = vmatmul.bf16.gmra.mxu0 %v187
    %v372 = vpop.f32.mrf.mxu0
    %v373 = vadd.f32 0.0, %v372
    %v374 = vpop.f32.mrf.mxu0
    %v375 = vadd.f32 0.0, %v374
    %376 = vmatmul.bf16.gmra.mxu0 %v189
    %v377 = vpop.f32.mrf.mxu0
    %v378 = vadd.f32 0.0, %v377
    %v379 = vpop.f32.mrf.mxu0
    %v380 = vadd.f32 0.0, %v379
    %381 = vmatmul.bf16.gmra.mxu0 %v191
    %v382 = vpop.f32.mrf.mxu0
    %v383 = vadd.f32 0.0, %v382
    %v384 = vpop.f32.mrf.mxu0
    %v385 = vadd.f32 0.0, %v384
    %386 = vmatmul.bf16.gmra.mxu0 %v193
    %v387 = vpop.f32.mrf.mxu0
    %v388 = vadd.f32 0.0, %v387
    %v389 = vpop.f32.mrf.mxu0
    %v390 = vadd.f32 0.0, %v389
    %391 = vmatmul.bf16.gmra.mxu0 %v195
    %v392 = vpop.f32.mrf.mxu0
    %v393 = vadd.f32 0.0, %v392
    %v394 = vpop.f32.mrf.mxu0
    %v395 = vadd.f32 0.0, %v394
    %396 = vmatmul.bf16.gmra.mxu0 %v197
    %v397 = vpop.f32.mrf.mxu0
    %v398 = vadd.f32 0.0, %v397
    %v399 = vpop.f32.mrf.mxu0
    %v400 = vadd.f32 0.0, %v399
    %401 = vmatmul.bf16.gmra.mxu0 %v199
    %v402 = vpop.f32.mrf.mxu0
    %v403 = vadd.f32 0.0, %v402
    %v404 = vpop.f32.mrf.mxu0
    %v405 = vadd.f32 0.0, %v404
    %406 = vmatmul.bf16.gmra.mxu0 %v201
    %v407 = vpop.f32.mrf.mxu0
    %v408 = vadd.f32 0.0, %v407
    %v409 = vpop.f32.mrf.mxu0
    %v410 = vadd.f32 0.0, %v409
    %411 = vmatmul.bf16.gmra.mxu0 %v203
    %v412 = vpop.f32.mrf.mxu0
    %v413 = vadd.f32 0.0, %v412
    %v414 = vpop.f32.mrf.mxu0
    %v415 = vadd.f32 0.0, %v414
    %416 = vmatmul.bf16.gmra.mxu0 %v205
    %v417 = vpop.f32.mrf.mxu0
    %v418 = vadd.f32 0.0, %v417
    %v419 = vpop.f32.mrf.mxu0
    %v420 = vadd.f32 0.0, %v419
    %421 = vmatmul.bf16.gmra.mxu0 %v207
    %v422 = vpop.f32.mrf.mxu0
    %v423 = vadd.f32 0.0, %v422
    %v424 = vpop.f32.mrf.mxu0
    %v425 = vadd.f32 0.0, %v424
    %426 = vmatmul.bf16.gmra.mxu0 %v209
    %v427 = vpop.f32.mrf.mxu0
    %v428 = vadd.f32 0.0, %v427
    %v429 = vpop.f32.mrf.mxu0
    %v430 = vadd.f32 0.0, %v429
    %431 = vmatmul.bf16.gmra.mxu0 %v211
    %v432 = vpop.f32.mrf.mxu0
    %v433 = vadd.f32 0.0, %v432
    %v434 = vpop.f32.mrf.mxu0
    %v435 = vadd.f32 0.0, %v434
    %436 = vmatmul.bf16.gmra.mxu0 %v213
    %v437 = vpop.f32.mrf.mxu0
    %v438 = vadd.f32 0.0, %v437
    %v439 = vpop.f32.mrf.mxu0
    %v440 = vadd.f32 0.0, %v439
    %441 = vmatmul.bf16.gmra.mxu0 %v215
    %v442 = vpop.f32.mrf.mxu0
    %v443 = vadd.f32 0.0, %v442
    %v444 = vpop.f32.mrf.mxu0
    %v445 = vadd.f32 0.0, %v444
    %446 = vmatmul.bf16.gmra.mxu0 %v217
    %v447 = vpop.f32.mrf.mxu0
    %v448 = vadd.f32 0.0, %v447
    %v449 = vpop.f32.mrf.mxu0
    %v450 = vadd.f32 0.0, %v449
    %451 = vdwg.mxu0
    %452 = vmatpush.bf16.msra.mxu0 0
    %453 = vmatpush.bf16.msra.mxu0 0
    %454 = vmatpush.bf16.msra.mxu0 0
    %455 = vmatpush.bf16.msra.mxu0 %v361
    %456 = vmatpush.bf16.msra.mxu0 %v296
    %457 = vmatpush.bf16.msra.mxu0 %v295
    %458 = vmatpush.bf16.msra.mxu0 %v294
    %459 = vmatpush.bf16.msra.mxu0 %v293
    %460 = vmatmul.bf16.gmra.mxu0 %v312
    %v461 = vpop.f32.mrf.mxu0
    %v462 = vadd.f32 %v373, %v461
    %v463 = vpop.f32.mrf.mxu0
    %v464 = vadd.f32 %v375, %v463
    %465 = vmatmul.bf16.gmra.mxu0 %v315
    %v466 = vpop.f32.mrf.mxu0
    %v467 = vadd.f32 %v378, %v466
    %v468 = vpop.f32.mrf.mxu0
    %v469 = vadd.f32 %v380, %v468
    %470 = vmatmul.bf16.gmra.mxu0 %v318
    %v471 = vpop.f32.mrf.mxu0
    %v472 = vadd.f32 %v383, %v471
    %v473 = vpop.f32.mrf.mxu0
    %v474 = vadd.f32 %v385, %v473
    %475 = vmatmul.bf16.gmra.mxu0 %v321
    %v476 = vpop.f32.mrf.mxu0
    %v477 = vadd.f32 %v388, %v476
    %v478 = vpop.f32.mrf.mxu0
    %v479 = vadd.f32 %v390, %v478
    %480 = vmatmul.bf16.gmra.mxu0 %v324
    %v481 = vpop.f32.mrf.mxu0
    %v482 = vadd.f32 %v393, %v481
    %v483 = vpop.f32.mrf.mxu0
    %v484 = vadd.f32 %v395, %v483
    %485 = vmatmul.bf16.gmra.mxu0 %v327
    %v486 = vpop.f32.mrf.mxu0
    %v487 = vadd.f32 %v398, %v486
    %v488 = vpop.f32.mrf.mxu0
    %v489 = vadd.f32 %v400, %v488
    %490 = vmatmul.bf16.gmra.mxu0 %v330
    %v491 = vpop.f32.mrf.mxu0
    %v492 = vadd.f32 %v403, %v491
    %v493 = vpop.f32.mrf.mxu0
    %v494 = vadd.f32 %v405, %v493
    %495 = vmatmul.bf16.gmra.mxu0 %v333
    %v496 = vpop.f32.mrf.mxu0
    %v497 = vadd.f32 %v408, %v496
    %v498 = vpop.f32.mrf.mxu0
    %v499 = vadd.f32 %v410, %v498
    %500 = vmatmul.bf16.gmra.mxu0 %v336
    %v501 = vpop.f32.mrf.mxu0
    %v502 = vadd.f32 %v413, %v501
    %v503 = vpop.f32.mrf.mxu0
    %v504 = vadd.f32 %v415, %v503
    %505 = vmatmul.bf16.gmra.mxu0 %v339
    %v506 = vpop.f32.mrf.mxu0
    %v507 = vadd.f32 %v418, %v506
    %v508 = vpop.f32.mrf.mxu0
    %v509 = vadd.f32 %v420, %v508
    %510 = vmatmul.bf16.gmra.mxu0 %v342
    %v511 = vpop.f32.mrf.mxu0
    %v512 = vadd.f32 %v423, %v511
    %v513 = vpop.f32.mrf.mxu0
    %v514 = vadd.f32 %v425, %v513
    %515 = vmatmul.bf16.gmra.mxu0 %v345
    %v516 = vpop.f32.mrf.mxu0
    %v517 = vadd.f32 %v428, %v516
    %v518 = vpop.f32.mrf.mxu0
    %v519 = vadd.f32 %v430, %v518
    %520 = vmatmul.bf16.gmra.mxu0 %v348
    %v521 = vpop.f32.mrf.mxu0
    %v522 = vadd.f32 %v433, %v521
    %v523 = vpop.f32.mrf.mxu0
    %v524 = vadd.f32 %v435, %v523
    %525 = vmatmul.bf16.gmra.mxu0 %v351
    %v526 = vpop.f32.mrf.mxu0
    %v527 = vadd.f32 %v438, %v526
    %v528 = vpop.f32.mrf.mxu0
    %v529 = vadd.f32 %v440, %v528
    %530 = vmatmul.bf16.gmra.mxu0 %v354
    %v531 = vpop.f32.mrf.mxu0
    %v532 = vadd.f32 %v443, %v531
    %v533 = vpop.f32.mrf.mxu0
    %v534 = vadd.f32 %v445, %v533
    %535 = vmatmul.bf16.gmra.mxu0 %v357
    %v536 = vpop.f32.mrf.mxu0
    %v537 = vadd.f32 %v448, %v536
    %v538 = vpop.f32.mrf.mxu0
    %v539 = vadd.f32 %v450, %v538
    %540 = vdwg.mxu0
    %vm541 = vcmask 130048
    %v542 = vsel %vm541, %v462, 0.0
    %v543 = vsel %vm541, %v464, 0.0
    %v544 = vadd.f32 %v542, %v543
    %v545 = vsel %vm541, %v467, 0.0
    %v546 = vadd.f32 %v544, %v545
    %v547 = vsel %vm541, %v469, 0.0
    %v548 = vadd.f32 %v546, %v547
    %v549 = vsel %vm541, %v472, 0.0
    %v550 = vadd.f32 %v548, %v549
    %v551 = vsel %vm541, %v474, 0.0
    %v552 = vadd.f32 %v550, %v551
    %v553 = vsel %vm541, %v477, 0.0
    %v554 = vadd.f32 %v552, %v553
    %v555 = vsel %vm541, %v479, 0.0
    %v556 = vadd.f32 %v554, %v555
    %v557 = vsel %vm541, %v482, 0.0
    %v558 = vadd.f32 %v556, %v557
    %v559 = vsel %vm541, %v484, 0.0
    %v560 = vadd.f32 %v558, %v559
    %v561 = vsel %vm541, %v487, 0.0
    %v562 = vadd.f32 %v560, %v561
    %v563 = vsel %vm541, %v489, 0.0
    %v564 = vadd.f32 %v562, %v563
    %v565 = vsel %vm541, %v492, 0.0
    %v566 = vadd.f32 %v564, %v565
    %v567 = vsel %vm541, %v494, 0.0
    %v568 = vadd.f32 %v566, %v567
    %v569 = vsel %vm541, %v497, 0.0
    %v570 = vadd.f32 %v568, %v569
    %v571 = vsel %vm541, %v499, 0.0
    %v572 = vadd.f32 %v570, %v571
    %v573 = vsel %vm541, %v502, 0.0
    %v574 = vadd.f32 %v572, %v573
    %v575 = vsel %vm541, %v504, 0.0
    %v576 = vadd.f32 %v574, %v575
    %v577 = vsel %vm541, %v507, 0.0
    %v578 = vadd.f32 %v576, %v577
    %v579 = vsel %vm541, %v509, 0.0
    %v580 = vadd.f32 %v578, %v579
    %v581 = vsel %vm541, %v512, 0.0
    %v582 = vadd.f32 %v580, %v581
    %v583 = vsel %vm541, %v514, 0.0
    %v584 = vadd.f32 %v582, %v583
    %v585 = vsel %vm541, %v517, 0.0
    %v586 = vadd.f32 %v584, %v585
    %v587 = vsel %vm541, %v519, 0.0
    %v588 = vadd.f32 %v586, %v587
    %v589 = vsel %vm541, %v522, 0.0
    %v590 = vadd.f32 %v588, %v589
    %v591 = vsel %vm541, %v524, 0.0
    %v592 = vadd.f32 %v590, %v591
    %v593 = vsel %vm541, %v527, 0.0
    %v594 = vadd.f32 %v592, %v593
    %v595 = vsel %vm541, %v529, 0.0
    %v596 = vadd.f32 %v594, %v595
    %v597 = vsel %vm541, %v532, 0.0
    %v598 = vadd.f32 %v596, %v597
    %v599 = vsel %vm541, %v534, 0.0
    %v600 = vadd.f32 %v598, %v599
    %v601 = vsel %vm541, %v537, 0.0
    %v602 = vadd.f32 %v600, %v601
    %v603 = vsel %vm541, %v539, 0.0
    %v604 = vadd.f32 %v602, %v603
    %v605 = vrot.slane %v604, 4
    %v606 = vadd.f32 %v604, %v605
    %v607 = vrot.slane %v606, 2
    %v608 = vadd.f32 %v606, %v607
    %v609 = vrot.slane %v608, 1
    %v610 = vadd.f32 %v608, %v609
    %v611 = vmul.f32 %v610, 0.00390625
    %v612 = vmul.f32 %v462, %v462
    %v613 = vmul.f32 %v464, %v464
    %v614 = vmul.f32 %v467, %v467
    %v615 = vmul.f32 %v469, %v469
    %v616 = vmul.f32 %v472, %v472
    %v617 = vmul.f32 %v474, %v474
    %v618 = vmul.f32 %v477, %v477
    %v619 = vmul.f32 %v479, %v479
    %v620 = vmul.f32 %v482, %v482
    %v621 = vmul.f32 %v484, %v484
    %v622 = vmul.f32 %v487, %v487
    %v623 = vmul.f32 %v489, %v489
    %v624 = vmul.f32 %v492, %v492
    %v625 = vmul.f32 %v494, %v494
    %v626 = vmul.f32 %v497, %v497
    %v627 = vmul.f32 %v499, %v499
    %v628 = vmul.f32 %v502, %v502
    %v629 = vmul.f32 %v504, %v504
    %v630 = vmul.f32 %v507, %v507
    %v631 = vmul.f32 %v509, %v509
    %v632 = vmul.f32 %v512, %v512
    %v633 = vmul.f32 %v514, %v514
    %v634 = vmul.f32 %v517, %v517
    %v635 = vmul.f32 %v519, %v519
    %v636 = vmul.f32 %v522, %v522
    %v637 = vmul.f32 %v524, %v524
    %v638 = vmul.f32 %v527, %v527
    %v639 = vmul.f32 %v529, %v529
    %v640 = vmul.f32 %v532, %v532
    %v641 = vmul.f32 %v534, %v534
    %v642 = vmul.f32 %v537, %v537
    %v643 = vmul.f32 %v539, %v539
    %v644 = vsel %vm541, %v612, 0.0
    %v645 = vsel %vm541, %v613, 0.0
    %v646 = vadd.f32 %v644, %v645
    %v647 = vsel %vm541, %v614, 0.0
    %v648 = vadd.f32 %v646, %v647
    %v649 = vsel %vm541, %v615, 0.0
    %v650 = vadd.f32 %v648, %v649
    %v651 = vsel %vm541, %v616, 0.0
    %v652 = vadd.f32 %v650, %v651
    %v653 = vsel %vm541, %v617, 0.0
    %v654 = vadd.f32 %v652, %v653
    %v655 = vsel %vm541, %v618, 0.0
    %v656 = vadd.f32 %v654, %v655
    %v657 = vsel %vm541, %v619, 0.0
    %v658 = vadd.f32 %v656, %v657
    %v659 = vsel %vm541, %v620, 0.0
    %v660 = vadd.f32 %v658, %v659
    %v661 = vsel %vm541, %v621, 0.0
    %v662 = vadd.f32 %v660, %v661
    %v663 = vsel %vm541, %v622, 0.0
    %v664 = vadd.f32 %v662, %v663
    %v665 = vsel %vm541, %v623, 0.0
    %v666 = vadd.f32 %v664, %v665
    %v667 = vsel %vm541, %v624, 0.0
    %v668 = vadd.f32 %v666, %v667
    %v669 = vsel %vm541, %v625, 0.0
    %v670 = vadd.f32 %v668, %v669
    %v671 = vsel %vm541, %v626, 0.0
    %v672 = vadd.f32 %v670, %v671
    %v673 = vsel %vm541, %v627, 0.0
    %v674 = vadd.f32 %v672, %v673
    %v675 = vsel %vm541, %v628, 0.0
    %v676 = vadd.f32 %v674, %v675
    %v677 = vsel %vm541, %v629, 0.0
    %v678 = vadd.f32 %v676, %v677
    %v679 = vsel %vm541, %v630, 0.0
    %v680 = vadd.f32 %v678, %v679
    %v681 = vsel %vm541, %v631, 0.0
    %v682 = vadd.f32 %v680, %v681
    %v683 = vsel %vm541, %v632, 0.0
    %v684 = vadd.f32 %v682, %v683
    %v685 = vsel %vm541, %v633, 0.0
    %v686 = vadd.f32 %v684, %v685
    %v687 = vsel %vm541, %v634, 0.0
    %v688 = vadd.f32 %v686, %v687
    %v689 = vsel %vm541, %v635, 0.0
    %v690 = vadd.f32 %v688, %v689
    %v691 = vsel %vm541, %v636, 0.0
    %v692 = vadd.f32 %v690, %v691
    %v693 = vsel %vm541, %v637, 0.0
    %v694 = vadd.f32 %v692, %v693
    %v695 = vsel %vm541, %v638, 0.0
    %v696 = vadd.f32 %v694, %v695
    %v697 = vsel %vm541, %v639, 0.0
    %v698 = vadd.f32 %v696, %v697
    %v699 = vsel %vm541, %v640, 0.0
    %v700 = vadd.f32 %v698, %v699
    %v701 = vsel %vm541, %v641, 0.0
    %v702 = vadd.f32 %v700, %v701
    %v703 = vsel %vm541, %v642, 0.0
    %v704 = vadd.f32 %v702, %v703
    %v705 = vsel %vm541, %v643, 0.0
    %v706 = vadd.f32 %v704, %v705
    %v707 = vrot.slane %v706, 4
    %v708 = vadd.f32 %v706, %v707
    %v709 = vrot.slane %v708, 2
    %v710 = vadd.f32 %v708, %v709
    %v711 = vrot.slane %v710, 1
    %v712 = vadd.f32 %v710, %v711
    %v713 = vmul.f32 %v712, 0.00390625
    %v714 = vmul.f32 %v611, %v611
    %v715 = vsub.f32 %v713, %v714
    %v716 = vld [vmem:[%s2] sm:$0x1]
    %v717 = vadd.f32 %v715, 1e-05
    %v718 = vrsqrt.pop %v717
    %v719 = vmul.f32 %v718, %v717
    %v720 = vmul.f32 %v719, %v718
    %v721 = vmul.f32 0.5, %v720
    %v722 = vsub.f32 1.5, %v721
    %v723 = vmul.f32 %v718, %v722
    %vm724 = vweird.f32 %v717
    %vm725 = vweird.f32 %v718
    %vm726 = vmor %vm724, %vm725
    %v727 = vsel %vm726, %v718, %v723
    %v728 = vmul.f32 %v716, %v727
    %v729 = vld [vmem:[%s2 + $0x1] sm:$0x1]
    %v730 = vmul.f32 %v611, %v728
    %v731 = vsub.f32 %v729, %v730
    %v732 = vperm.slane %v728, 0
    %v733 = vmul.f32 %v462, %v732
    %v734 = vmul.f32 %v464, %v732
    %v735 = vmul.f32 %v467, %v732
    %v736 = vmul.f32 %v469, %v732
    %v737 = vmul.f32 %v472, %v732
    %v738 = vmul.f32 %v474, %v732
    %v739 = vmul.f32 %v477, %v732
    %v740 = vmul.f32 %v479, %v732
    %v741 = vmul.f32 %v482, %v732
    %v742 = vmul.f32 %v484, %v732
    %v743 = vmul.f32 %v487, %v732
    %v744 = vmul.f32 %v489, %v732
    %v745 = vmul.f32 %v492, %v732
    %v746 = vmul.f32 %v494, %v732
    %v747 = vmul.f32 %v497, %v732
    %v748 = vmul.f32 %v499, %v732
    %v749 = vmul.f32 %v502, %v732
    %v750 = vmul.f32 %v504, %v732
    %v751 = vmul.f32 %v507, %v732
    %v752 = vmul.f32 %v509, %v732
    %v753 = vmul.f32 %v512, %v732
    %v754 = vmul.f32 %v514, %v732
    %v755 = vmul.f32 %v517, %v732
    %v756 = vmul.f32 %v519, %v732
    %v757 = vmul.f32 %v522, %v732
    %v758 = vmul.f32 %v524, %v732
    %v759 = vmul.f32 %v527, %v732
    %v760 = vmul.f32 %v529, %v732
    %v761 = vmul.f32 %v532, %v732
    %v762 = vmul.f32 %v534, %v732
    %v763 = vmul.f32 %v537, %v732
    %v764 = vmul.f32 %v539, %v732
    %v765 = vperm.slane %v731, 0
    %v766 = vadd.f32 %v733, %v765
    %v767 = vadd.f32 %v734, %v765
    %v768 = vadd.f32 %v735, %v765
    %v769 = vadd.f32 %v736, %v765
    %v770 = vadd.f32 %v737, %v765
    %v771 = vadd.f32 %v738, %v765
    %v772 = vadd.f32 %v739, %v765
    %v773 = vadd.f32 %v740, %v765
    %v774 = vadd.f32 %v741, %v765
    %v775 = vadd.f32 %v742, %v765
    %v776 = vadd.f32 %v743, %v765
    %v777 = vadd.f32 %v744, %v765
    %v778 = vadd.f32 %v745, %v765
    %v779 = vadd.f32 %v746, %v765
    %v780 = vadd.f32 %v747, %v765
    %v781 = vadd.f32 %v748, %v765
    %v782 = vadd.f32 %v749, %v765
    %v783 = vadd.f32 %v750, %v765
    %v784 = vadd.f32 %v751, %v765
    %v785 = vadd.f32 %v752, %v765
    %v786 = vadd.f32 %v753, %v765
    %v787 = vadd.f32 %v754, %v765
    %v788 = vadd.f32 %v755, %v765
    %v789 = vadd.f32 %v756, %v765
    %v790 = vadd.f32 %v757, %v765
    %v791 = vadd.f32 %v758, %v765
    %v792 = vadd.f32 %v759, %v765
    %v793 = vadd.f32 %v760, %v765
    %v794 = vadd.f32 %v761, %v765
    %v795 = vadd.f32 %v762, %v765
    %v796 = vadd.f32 %v763, %v765
    %v797 = vadd.f32 %v764, %v765
    %v798 = vmax.f32 %v766, 0.0
    %v799 = vmax.f32 %v767, 0.0
    %v800 = vmax.f32 %v768, 0.0
    %v801 = vmax.f32 %v769, 0.0
    %v802 = vmax.f32 %v770, 0.0
    %v803 = vmax.f32 %v771, 0.0
    %v804 = vmax.f32 %v772, 0.0
    %v805 = vmax.f32 %v773, 0.0
    %v806 = vmax.f32 %v774, 0.0
    %v807 = vmax.f32 %v775, 0.0
    %v808 = vmax.f32 %v776, 0.0
    %v809 = vmax.f32 %v777, 0.0
    %v810 = vmax.f32 %v778, 0.0
    %v811 = vmax.f32 %v779, 0.0
    %v812 = vmax.f32 %v780, 0.0
    %v813 = vmax.f32 %v781, 0.0
    %v814 = vmax.f32 %v782, 0.0
    %v815 = vmax.f32 %v783, 0.0
    %v816 = vmax.f32 %v784, 0.0
    %v817 = vmax.f32 %v785, 0.0
    %v818 = vmax.f32 %v786, 0.0
    %v819 = vmax.f32 %v787, 0.0
    %v820 = vmax.f32 %v788, 0.0
    %v821 = vmax.f32 %v789, 0.0
    %v822 = vmax.f32 %v790, 0.0
    %v823 = vmax.f32 %v791, 0.0
    %v824 = vmax.f32 %v792, 0.0
    %v825 = vmax.f32 %v793, 0.0
    %v826 = vmax.f32 %v794, 0.0
    %v827 = vmax.f32 %v795, 0.0
    %v828 = vmax.f32 %v796, 0.0
    %v829 = vmax.f32 %v797, 0.0
    %v830 = vmax.f32 %v798, %v806
    %v831 = vmax.f32 %v799, %v807
    %v832 = vmax.f32 %v800, %v808
    %v833 = vmax.f32 %v801, %v809
    %v834 = vmax.f32 %v802, %v810
    %v835 = vmax.f32 %v803, %v811
    %v836 = vmax.f32 %v804, %v812
    %v837 = vmax.f32 %v805, %v813
    %v838 = vmax.f32 %v814, %v822
    %v839 = vmax.f32 %v815, %v823
    %v840 = vmax.f32 %v816, %v824
    %v841 = vmax.f32 %v817, %v825
    %v842 = vmax.f32 %v818, %v826
    %v843 = vmax.f32 %v819, %v827
    %v844 = vmax.f32 %v820, %v828
    %v845 = vmax.f32 %v821, %v829
    %v846 = vmax.f32 %v830, %v838
    %v847 = vmax.f32 %v831, %v839
    %v848 = vmax.f32 %v832, %v840
    %v849 = vmax.f32 %v833, %v841
    %v850 = vmax.f32 %v834, %v842
    %v851 = vmax.f32 %v835, %v843
    %v852 = vmax.f32 %v836, %v844
    %v853 = vmax.f32 %v837, %v845
    %854 = vst.msk [vmem:[#allocation2] sm:$0xff] %vm541, %v846
    %855 = vst.msk [vmem:[#allocation2 + $0x8] sm:$0xff] %vm541, %v847
    %856 = vst.msk [vmem:[#allocation2 + $0x10] sm:$0xff] %vm541, %v848
    %857 = vst.msk [vmem:[#allocation2 + $0x18] sm:$0xff] %vm541, %v849
    %858 = vst.msk [vmem:[#allocation2 + $0x20] sm:$0xff] %vm541, %v850
    %859 = vst.msk [vmem:[#allocation2 + $0x28] sm:$0xff] %vm541, %v851
    %860 = vst.msk [vmem:[#allocation2 + $0x30] sm:$0xff] %vm541, %v852
    %861 = vst.msk [vmem:[#allocation2 + $0x38] sm:$0xff] %vm541, %v853
    %v862 = vld [vmem:[#allocation2] sm:$0xf]
    %v863 = vpack.c.bf16 %v862, %v862
    %v864 = vld [vmem:[%s3] sm:$0xf]
    %v865 = vld [vmem:[%s3 + $0x4] sm:$0xf]
    %v866 = vld [vmem:[#allocation2 + $0x4] sm:$0xf]
    %v867 = vpack.c.bf16 %v866, %v866
    %s868 = scalar_lea.vmem %s3, 8
    %v869 = vld [vmem:[%s868] sm:$0xf]
    %v870 = vld [vmem:[%s868 + $0x4] sm:$0xf]
    %v873 = vunpack.c.l.b16 %v869
    %v874 = vunpack.c.l.b16 %v870
    %v875 = vpack.c.b16 %v874, %v873
    %v878 = vsel %vm541, %v867, 0
    %880 = vmatpush.bf16.msra.mxu0 0
    %881 = vmatpush.bf16.msra.mxu0 0
    %882 = vmatpush.bf16.msra.mxu0 0
    %883 = vmatpush.bf16.msra.mxu0 0
    %884 = vmatpush.bf16.msra.mxu0 0
    %885 = vmatpush.bf16.msra.mxu0 0
    %886 = vmatpush.bf16.msra.mxu0 0
    %887 = vmatpush.bf16.msra.mxu0 %v875
    %888 = vmatmul.bf16.gmra.mxu0 %v878
    %v889 = vpop.f32.mrf.mxu0
    %v890 = vadd.f32 0.0, %v889
    %v891 = vpop.f32.mrf.mxu0
    %892 = vdwg.mxu0
    %v895 = vunpack.c.l.b16 %v864
    %v896 = vunpack.c.l.b16 %v865
    %v897 = vpack.c.b16 %v896, %v895
    %v900 = vsel %vm541, %v863, 0
    %902 = vmatpush.bf16.msra.mxu0 0
    %903 = vmatpush.bf16.msra.mxu0 0
    %904 = vmatpush.bf16.msra.mxu0 0
    %905 = vmatpush.bf16.msra.mxu0 0
    %906 = vmatpush.bf16.msra.mxu0 0
    %907 = vmatpush.bf16.msra.mxu0 0
    %908 = vmatpush.bf16.msra.mxu0 0
    %909 = vmatpush.bf16.msra.mxu0 %v897
    %910 = vmatmul.bf16.gmra.mxu0 %v900
    %v911 = vpop.f32.mrf.mxu0
    %v912 = vadd.f32 %v890, %v911
    %v913 = vpop.f32.mrf.mxu0
    %914 = vdwg.mxu0
    %v915 = vld [vmem:[#allocation2 + $0x8] sm:$0xf]
    %v916 = vpack.c.bf16 %v915, %v915
    %s917 = scalar_lea.vmem %s3, 16
    %v918 = vld [vmem:[%s917] sm:$0xf]
    %v919 = vld [vmem:[%s917 + $0x4] sm:$0xf]
    %v922 = vunpack.c.l.b16 %v918
    %v923 = vunpack.c.l.b16 %v919
    %v924 = vpack.c.b16 %v923, %v922
    %v927 = vsel %vm541, %v916, 0
    %929 = vmatpush.bf16.msra.mxu0 0
    %930 = vmatpush.bf16.msra.mxu0 0
    %931 = vmatpush.bf16.msra.mxu0 0
    %932 = vmatpush.bf16.msra.mxu0 0
    %933 = vmatpush.bf16.msra.mxu0 0
    %934 = vmatpush.bf16.msra.mxu0 0
    %935 = vmatpush.bf16.msra.mxu0 0
    %936 = vmatpush.bf16.msra.mxu0 %v924
    %937 = vmatmul.bf16.gmra.mxu0 %v927
    %v938 = vpop.f32.mrf.mxu0
    %v939 = vadd.f32 0.0, %v938
    %v940 = vpop.f32.mrf.mxu0
    %941 = vdwg.mxu0
    %v942 = vadd.f32 %v912, %v939
    %v943 = vld [vmem:[#allocation2 + $0xc] sm:$0xf]
    %v944 = vpack.c.bf16 %v943, %v943
    %s945 = scalar_lea.vmem %s3, 24
    %v946 = vld [vmem:[%s945] sm:$0xf]
    %v947 = vld [vmem:[%s945 + $0x4] sm:$0xf]
    %v950 = vunpack.c.l.b16 %v946
    %v951 = vunpack.c.l.b16 %v947
    %v952 = vpack.c.b16 %v951, %v950
    %v955 = vsel %vm541, %v944, 0
    %957 = vmatpush.bf16.msra.mxu0 0
    %958 = vmatpush.bf16.msra.mxu0 0
    %959 = vmatpush.bf16.msra.mxu0 0
    %960 = vmatpush.bf16.msra.mxu0 0
    %961 = vmatpush.bf16.msra.mxu0 0
    %962 = vmatpush.bf16.msra.mxu0 0
    %963 = vmatpush.bf16.msra.mxu0 0
    %964 = vmatpush.bf16.msra.mxu0 %v952
    %965 = vmatmul.bf16.gmra.mxu0 %v955
    %v966 = vpop.f32.mrf.mxu0
    %v967 = vadd.f32 0.0, %v966
    %v968 = vpop.f32.mrf.mxu0
    %969 = vdwg.mxu0
    %v970 = vadd.f32 %v942, %v967
    %v971 = vld [vmem:[#allocation2 + $0x10] sm:$0xf]
    %v972 = vpack.c.bf16 %v971, %v971
    %s973 = scalar_lea.vmem %s3, 32
    %v974 = vld [vmem:[%s973] sm:$0xf]
    %v975 = vld [vmem:[%s973 + $0x4] sm:$0xf]
    %v978 = vunpack.c.l.b16 %v974
    %v979 = vunpack.c.l.b16 %v975
    %v980 = vpack.c.b16 %v979, %v978
    %v983 = vsel %vm541, %v972, 0
    %985 = vmatpush.bf16.msra.mxu0 0
    %986 = vmatpush.bf16.msra.mxu0 0
    %987 = vmatpush.bf16.msra.mxu0 0
    %988 = vmatpush.bf16.msra.mxu0 0
    %989 = vmatpush.bf16.msra.mxu0 0
    %990 = vmatpush.bf16.msra.mxu0 0
    %991 = vmatpush.bf16.msra.mxu0 0
    %992 = vmatpush.bf16.msra.mxu0 %v980
    %993 = vmatmul.bf16.gmra.mxu0 %v983
    %v994 = vpop.f32.mrf.mxu0
    %v995 = vadd.f32 0.0, %v994
    %v996 = vpop.f32.mrf.mxu0
    %997 = vdwg.mxu0
    %v998 = vadd.f32 %v970, %v995
    %v999 = vld [vmem:[#allocation2 + $0x14] sm:$0xf]
    %v1000 = vpack.c.bf16 %v999, %v999
    %s1001 = scalar_lea.vmem %s3, 40
    %v1002 = vld [vmem:[%s1001] sm:$0xf]
    %v1003 = vld [vmem:[%s1001 + $0x4] sm:$0xf]
    %v1006 = vunpack.c.l.b16 %v1002
    %v1007 = vunpack.c.l.b16 %v1003
    %v1008 = vpack.c.b16 %v1007, %v1006
    %v1011 = vsel %vm541, %v1000, 0
    %1013 = vmatpush.bf16.msra.mxu0 0
    %1014 = vmatpush.bf16.msra.mxu0 0
    %1015 = vmatpush.bf16.msra.mxu0 0
    %1016 = vmatpush.bf16.msra.mxu0 0
    %1017 = vmatpush.bf16.msra.mxu0 0
    %1018 = vmatpush.bf16.msra.mxu0 0
    %1019 = vmatpush.bf16.msra.mxu0 0
    %1020 = vmatpush.bf16.msra.mxu0 %v1008
    %1021 = vmatmul.bf16.gmra.mxu0 %v1011
    %v1022 = vpop.f32.mrf.mxu0
    %v1023 = vadd.f32 0.0, %v1022
    %v1024 = vpop.f32.mrf.mxu0
    %1025 = vdwg.mxu0
    %v1026 = vadd.f32 %v998, %v1023
    %v1027 = vld [vmem:[#allocation2 + $0x18] sm:$0xf]
    %v1028 = vpack.c.bf16 %v1027, %v1027
    %s1029 = scalar_lea.vmem %s3, 48
    %v1030 = vld [vmem:[%s1029] sm:$0xf]
    %v1031 = vld [vmem:[%s1029 + $0x4] sm:$0xf]
    %v1034 = vunpack.c.l.b16 %v1030
    %v1035 = vunpack.c.l.b16 %v1031
    %v1036 = vpack.c.b16 %v1035, %v1034
    %v1039 = vsel %vm541, %v1028, 0
    %1041 = vmatpush.bf16.msra.mxu0 0
    %1042 = vmatpush.bf16.msra.mxu0 0
    %1043 = vmatpush.bf16.msra.mxu0 0
    %1044 = vmatpush.bf16.msra.mxu0 0
    %1045 = vmatpush.bf16.msra.mxu0 0
    %1046 = vmatpush.bf16.msra.mxu0 0
    %1047 = vmatpush.bf16.msra.mxu0 0
    %1048 = vmatpush.bf16.msra.mxu0 %v1036
    %1049 = vmatmul.bf16.gmra.mxu0 %v1039
    %v1050 = vpop.f32.mrf.mxu0
    %v1051 = vadd.f32 0.0, %v1050
    %v1052 = vpop.f32.mrf.mxu0
    %1053 = vdwg.mxu0
    %v1054 = vadd.f32 %v1026, %v1051
    %v1055 = vld [vmem:[#allocation2 + $0x1c] sm:$0xf]
    %v1056 = vpack.c.bf16 %v1055, %v1055
    %s1057 = scalar_lea.vmem %s3, 56
    %v1058 = vld [vmem:[%s1057] sm:$0xf]
    %v1059 = vld [vmem:[%s1057 + $0x4] sm:$0xf]
    %v1062 = vunpack.c.l.b16 %v1058
    %v1063 = vunpack.c.l.b16 %v1059
    %v1064 = vpack.c.b16 %v1063, %v1062
    %v1067 = vsel %vm541, %v1056, 0
    %1069 = vmatpush.bf16.msra.mxu0 0
    %1070 = vmatpush.bf16.msra.mxu0 0
    %1071 = vmatpush.bf16.msra.mxu0 0
    %1072 = vmatpush.bf16.msra.mxu0 0
    %1073 = vmatpush.bf16.msra.mxu0 0
    %1074 = vmatpush.bf16.msra.mxu0 0
    %1075 = vmatpush.bf16.msra.mxu0 0
    %1076 = vmatpush.bf16.msra.mxu0 %v1064
    %1077 = vmatmul.bf16.gmra.mxu0 %v1067
    %v1078 = vpop.f32.mrf.mxu0
    %v1079 = vadd.f32 0.0, %v1078
    %v1080 = vpop.f32.mrf.mxu0
    %1081 = vdwg.mxu0
    %v1082 = vadd.f32 %v1054, %v1079
    %v1083 = vld [vmem:[#allocation2 + $0x20] sm:$0xf]
    %v1084 = vpack.c.bf16 %v1083, %v1083
    %s1085 = scalar_lea.vmem %s3, 64
    %v1086 = vld [vmem:[%s1085] sm:$0xf]
    %v1087 = vld [vmem:[%s1085 + $0x4] sm:$0xf]
    %v1090 = vunpack.c.l.b16 %v1086
    %v1091 = vunpack.c.l.b16 %v1087
    %v1092 = vpack.c.b16 %v1091, %v1090
    %v1095 = vsel %vm541, %v1084, 0
    %1097 = vmatpush.bf16.msra.mxu0 0
    %1098 = vmatpush.bf16.msra.mxu0 0
    %1099 = vmatpush.bf16.msra.mxu0 0
    %1100 = vmatpush.bf16.msra.mxu0 0
    %1101 = vmatpush.bf16.msra.mxu0 0
    %1102 = vmatpush.bf16.msra.mxu0 0
    %1103 = vmatpush.bf16.msra.mxu0 0
    %1104 = vmatpush.bf16.msra.mxu0 %v1092
    %1105 = vmatmul.bf16.gmra.mxu0 %v1095
    %v1106 = vpop.f32.mrf.mxu0
    %v1107 = vadd.f32 0.0, %v1106
    %v1108 = vpop.f32.mrf.mxu0
    %1109 = vdwg.mxu0
    %v1110 = vadd.f32 %v1082, %v1107
    %v1111 = vld [vmem:[#allocation2 + $0x24] sm:$0xf]
    %v1112 = vpack.c.bf16 %v1111, %v1111
    %s1113 = scalar_lea.vmem %s3, 72
    %v1114 = vld [vmem:[%s1113] sm:$0xf]
    %v1115 = vld [vmem:[%s1113 + $0x4] sm:$0xf]
    %v1118 = vunpack.c.l.b16 %v1114
    %v1119 = vunpack.c.l.b16 %v1115
    %v1120 = vpack.c.b16 %v1119, %v1118
    %v1123 = vsel %vm541, %v1112, 0
    %1125 = vmatpush.bf16.msra.mxu0 0
    %1126 = vmatpush.bf16.msra.mxu0 0
    %1127 = vmatpush.bf16.msra.mxu0 0
    %1128 = vmatpush.bf16.msra.mxu0 0
    %1129 = vmatpush.bf16.msra.mxu0 0
    %1130 = vmatpush.bf16.msra.mxu0 0
    %1131 = vmatpush.bf16.msra.mxu0 0
    %1132 = vmatpush.bf16.msra.mxu0 %v1120
    %1133 = vmatmul.bf16.gmra.mxu0 %v1123
    %v1134 = vpop.f32.mrf.mxu0
    %v1135 = vadd.f32 0.0, %v1134
    %v1136 = vpop.f32.mrf.mxu0
    %1137 = vdwg.mxu0
    %v1138 = vadd.f32 %v1110, %v1135
    %v1139 = vld [vmem:[#allocation2 + $0x28] sm:$0xf]
    %v1140 = vpack.c.bf16 %v1139, %v1139
    %s1141 = scalar_lea.vmem %s3, 80
    %v1142 = vld [vmem:[%s1141] sm:$0xf]
    %v1143 = vld [vmem:[%s1141 + $0x4] sm:$0xf]
    %v1146 = vunpack.c.l.b16 %v1142
    %v1147 = vunpack.c.l.b16 %v1143
    %v1148 = vpack.c.b16 %v1147, %v1146
    %v1151 = vsel %vm541, %v1140, 0
    %1153 = vmatpush.bf16.msra.mxu0 0
    %1154 = vmatpush.bf16.msra.mxu0 0
    %1155 = vmatpush.bf16.msra.mxu0 0
    %1156 = vmatpush.bf16.msra.mxu0 0
    %1157 = vmatpush.bf16.msra.mxu0 0
    %1158 = vmatpush.bf16.msra.mxu0 0
    %1159 = vmatpush.bf16.msra.mxu0 0
    %1160 = vmatpush.bf16.msra.mxu0 %v1148
    %1161 = vmatmul.bf16.gmra.mxu0 %v1151
    %v1162 = vpop.f32.mrf.mxu0
    %v1163 = vadd.f32 0.0, %v1162
    %v1164 = vpop.f32.mrf.mxu0
    %1165 = vdwg.mxu0
    %v1166 = vadd.f32 %v1138, %v1163
    %v1167 = vld [vmem:[#allocation2 + $0x2c] sm:$0xf]
    %v1168 = vpack.c.bf16 %v1167, %v1167
    %s1169 = scalar_lea.vmem %s3, 88
    %v1170 = vld [vmem:[%s1169] sm:$0xf]
    %v1171 = vld [vmem:[%s1169 + $0x4] sm:$0xf]
    %v1174 = vunpack.c.l.b16 %v1170
    %v1175 = vunpack.c.l.b16 %v1171
    %v1176 = vpack.c.b16 %v1175, %v1174
    %v1179 = vsel %vm541, %v1168, 0
    %1181 = vmatpush.bf16.msra.mxu0 0
    %1182 = vmatpush.bf16.msra.mxu0 0
    %1183 = vmatpush.bf16.msra.mxu0 0
    %1184 = vmatpush.bf16.msra.mxu0 0
    %1185 = vmatpush.bf16.msra.mxu0 0
    %1186 = vmatpush.bf16.msra.mxu0 0
    %1187 = vmatpush.bf16.msra.mxu0 0
    %1188 = vmatpush.bf16.msra.mxu0 %v1176
    %1189 = vmatmul.bf16.gmra.mxu0 %v1179
    %v1190 = vpop.f32.mrf.mxu0
    %v1191 = vadd.f32 0.0, %v1190
    %v1192 = vpop.f32.mrf.mxu0
    %1193 = vdwg.mxu0
    %v1194 = vadd.f32 %v1166, %v1191
    %v1195 = vld [vmem:[#allocation2 + $0x30] sm:$0xf]
    %v1196 = vpack.c.bf16 %v1195, %v1195
    %s1197 = scalar_lea.vmem %s3, 96
    %v1198 = vld [vmem:[%s1197] sm:$0xf]
    %v1199 = vld [vmem:[%s1197 + $0x4] sm:$0xf]
    %v1202 = vunpack.c.l.b16 %v1198
    %v1203 = vunpack.c.l.b16 %v1199
    %v1204 = vpack.c.b16 %v1203, %v1202
    %v1207 = vsel %vm541, %v1196, 0
    %1209 = vmatpush.bf16.msra.mxu0 0
    %1210 = vmatpush.bf16.msra.mxu0 0
    %1211 = vmatpush.bf16.msra.mxu0 0
    %1212 = vmatpush.bf16.msra.mxu0 0
    %1213 = vmatpush.bf16.msra.mxu0 0
    %1214 = vmatpush.bf16.msra.mxu0 0
    %1215 = vmatpush.bf16.msra.mxu0 0
    %1216 = vmatpush.bf16.msra.mxu0 %v1204
    %1217 = vmatmul.bf16.gmra.mxu0 %v1207
    %v1218 = vpop.f32.mrf.mxu0
    %v1219 = vadd.f32 0.0, %v1218
    %v1220 = vpop.f32.mrf.mxu0
    %1221 = vdwg.mxu0
    %v1222 = vadd.f32 %v1194, %v1219
    %v1223 = vld [vmem:[#allocation2 + $0x34] sm:$0xf]
    %v1224 = vpack.c.bf16 %v1223, %v1223
    %s1225 = scalar_lea.vmem %s3, 104
    %v1226 = vld [vmem:[%s1225] sm:$0xf]
    %v1227 = vld [vmem:[%s1225 + $0x4] sm:$0xf]
    %v1230 = vunpack.c.l.b16 %v1226
    %v1231 = vunpack.c.l.b16 %v1227
    %v1232 = vpack.c.b16 %v1231, %v1230
    %v1235 = vsel %vm541, %v1224, 0
    %1237 = vmatpush.bf16.msra.mxu0 0
    %1238 = vmatpush.bf16.msra.mxu0 0
    %1239 = vmatpush.bf16.msra.mxu0 0
    %1240 = vmatpush.bf16.msra.mxu0 0
    %1241 = vmatpush.bf16.msra.mxu0 0
    %1242 = vmatpush.bf16.msra.mxu0 0
    %1243 = vmatpush.bf16.msra.mxu0 0
    %1244 = vmatpush.bf16.msra.mxu0 %v1232
    %1245 = vmatmul.bf16.gmra.mxu0 %v1235
    %v1246 = vpop.f32.mrf.mxu0
    %v1247 = vadd.f32 0.0, %v1246
    %v1248 = vpop.f32.mrf.mxu0
    %1249 = vdwg.mxu0
    %v1250 = vadd.f32 %v1222, %v1247
    %v1251 = vld [vmem:[#allocation2 + $0x38] sm:$0xf]
    %v1252 = vpack.c.bf16 %v1251, %v1251
    %s1253 = scalar_lea.vmem %s3, 112
    %v1254 = vld [vmem:[%s1253] sm:$0xf]
    %v1255 = vld [vmem:[%s1253 + $0x4] sm:$0xf]
    %v1258 = vunpack.c.l.b16 %v1254
    %v1259 = vunpack.c.l.b16 %v1255
    %v1260 = vpack.c.b16 %v1259, %v1258
    %v1263 = vsel %vm541, %v1252, 0
    %1265 = vmatpush.bf16.msra.mxu0 0
    %1266 = vmatpush.bf16.msra.mxu0 0
    %1267 = vmatpush.bf16.msra.mxu0 0
    %1268 = vmatpush.bf16.msra.mxu0 0
    %1269 = vmatpush.bf16.msra.mxu0 0
    %1270 = vmatpush.bf16.msra.mxu0 0
    %1271 = vmatpush.bf16.msra.mxu0 0
    %1272 = vmatpush.bf16.msra.mxu0 %v1260
    %1273 = vmatmul.bf16.gmra.mxu0 %v1263
    %v1274 = vpop.f32.mrf.mxu0
    %v1275 = vadd.f32 0.0, %v1274
    %v1276 = vpop.f32.mrf.mxu0
    %1277 = vdwg.mxu0
    %v1278 = vadd.f32 %v1250, %v1275
    %v1279 = vld [vmem:[#allocation2 + $0x3c] sm:$0xf]
    %v1280 = vpack.c.bf16 %v1279, %v1279
    %s1281 = scalar_lea.vmem %s3, 120
    %v1282 = vld [vmem:[%s1281] sm:$0xf]
    %v1283 = vld [vmem:[%s1281 + $0x4] sm:$0xf]
    %v1286 = vunpack.c.l.b16 %v1282
    %v1287 = vunpack.c.l.b16 %v1283
    %v1288 = vpack.c.b16 %v1287, %v1286
    %v1291 = vsel %vm541, %v1280, 0
    %1293 = vmatpush.bf16.msra.mxu0 0
    %1294 = vmatpush.bf16.msra.mxu0 0
    %1295 = vmatpush.bf16.msra.mxu0 0
    %1296 = vmatpush.bf16.msra.mxu0 0
    %1297 = vmatpush.bf16.msra.mxu0 0
    %1298 = vmatpush.bf16.msra.mxu0 0
    %1299 = vmatpush.bf16.msra.mxu0 0
    %1300 = vmatpush.bf16.msra.mxu0 %v1288
    %1301 = vmatmul.bf16.gmra.mxu0 %v1291
    %v1302 = vpop.f32.mrf.mxu0
    %v1303 = vadd.f32 0.0, %v1302
    %v1304 = vpop.f32.mrf.mxu0
    %1305 = vdwg.mxu0
    %v1306 = vadd.f32 %v1278, %v1303
    %vm1307 = vcmask 977920
    %v1308 = vsel %vm1307, %v1306, 0.0
    %v1309 = vrot.slane %v1308, 4
    %v1310 = vadd.f32 %v1308, %v1309
    %v1311 = vrot.slane %v1310, 2
    %v1312 = vadd.f32 %v1310, %v1311
    %v1313 = vrot.slane %v1312, 1
    %v1314 = vadd.f32 %v1312, %v1313
    %v1315 = vrcp.pop 4.0
    %v1316 = vmul.f32 4.0, %v1315
    %v1317 = vsub.f32 1.0, %v1316
    %v1318 = vmul.f32 %v1315, %v1317
    %v1319 = vadd.f32 %v1315, %v1318
    %vm1320 = vweird.f32 %v1315
    %v1321 = vsel %vm1320, %v1315, %v1319
    %v1322 = vmul.f32 %v1314, %v1321
    %v1323 = vmul.f32 %v1306, %v1306
    %v1324 = vsel %vm1307, %v1323, 0.0
    %v1325 = vrot.slane %v1324, 4
    %v1326 = vadd.f32 %v1324, %v1325
    %v1327 = vrot.slane %v1326, 2
    %v1328 = vadd.f32 %v1326, %v1327
    %v1329 = vrot.slane %v1328, 1
    %v1330 = vadd.f32 %v1328, %v1329
    %v1331 = vmul.f32 %v1330, %v1321
    %v1332 = vmul.f32 %v1322, %v1322
    %v1333 = vsub.f32 %v1331, %v1332
    %v1334 = vld [vmem:[%s4] sm:$0x1]
    %v1335 = vadd.f32 %v1333, 1e-05
    %v1336 = vrsqrt.pop %v1335
    %v1337 = vmul.f32 %v1336, %v1335
    %v1338 = vmul.f32 %v1337, %v1336
    %v1339 = vmul.f32 0.5, %v1338
    %v1340 = vsub.f32 1.5, %v1339
    %v1341 = vmul.f32 %v1336, %v1340
    %vm1342 = vweird.f32 %v1335
    %vm1343 = vweird.f32 %v1336
    %vm1344 = vmor %vm1342, %vm1343
    %v1345 = vsel %vm1344, %v1336, %v1341
    %v1346 = vmul.f32 %v1334, %v1345
    %v1347 = vld [vmem:[%s4 + $0x1] sm:$0x1]
    %v1348 = vmul.f32 %v1322, %v1346
    %v1349 = vsub.f32 %v1347, %v1348
    %v1350 = vperm.slane %v1346, 0
    %v1351 = vmul.f32 %v1306, %v1350
    %v1352 = vperm.slane %v1349, 0
    %v1353 = vadd.f32 %v1351, %v1352
    %v1354 = vmax.f32 %v1353, 0.0
    %v1355 = vpack.c.bf16 %v1354, %v1354
    %v1356 = vld [vmem:[%s5] sm:$0xf]
    %v1357 = vld [vmem:[%s5 + $0x4] sm:$0xf]
    %v1358 = vld [vmem:[%s5 + $0x8] sm:$0xf]
    %v1359 = vld [vmem:[%s5 + $0xc] sm:$0xf]
    %v1360 = vld [vmem:[%s5 + $0x10] sm:$0xf]
    %v1361 = vld [vmem:[%s5 + $0x14] sm:$0xf]
    %v1362 = vld [vmem:[%s5 + $0x18] sm:$0xf]
    %v1363 = vld [vmem:[%s5 + $0x1c] sm:$0xf]
    %v1364 = vld [vmem:[%s5 + $0x20] sm:$0xf]
    %v1365 = vld [vmem:[%s5 + $0x24] sm:$0xf]
    %v1366 = vld [vmem:[%s5 + $0x28] sm:$0xf]
    %v1367 = vld [vmem:[%s5 + $0x2c] sm:$0xf]
    %v1368 = vld [vmem:[%s5 + $0x30] sm:$0xf]
    %v1369 = vld [vmem:[%s5 + $0x34] sm:$0xf]
    %v1370 = vld [vmem:[%s5 + $0x38] sm:$0xf]
    %v1386 = vunpack.c.l.b16 %v1356
    %v1387 = vunpack.c.l.b16 %v1357
    %v1388 = vunpack.c.l.b16 %v1358
    %v1389 = vunpack.c.l.b16 %v1359
    %v1390 = vunpack.c.l.b16 %v1360
    %v1391 = vunpack.c.l.b16 %v1361
    %v1392 = vunpack.c.l.b16 %v1362
    %v1393 = vunpack.c.l.b16 %v1363
    %v1394 = vunpack.c.l.b16 %v1364
    %v1395 = vunpack.c.l.b16 %v1365
    %v1396 = vunpack.c.l.b16 %v1366
    %v1397 = vunpack.c.l.b16 %v1367
    %v1398 = vunpack.c.l.b16 %v1368
    %v1399 = vunpack.c.l.b16 %v1369
    %v1400 = vunpack.c.l.b16 %v1370
    %v1401 = vpack.c.b16 %v1387, %v1386
    %v1402 = vpack.c.b16 %v1389, %v1388
    %v1403 = vpack.c.b16 %v1391, %v1390
    %v1404 = vpack.c.b16 %v1393, %v1392
    %v1405 = vpack.c.b16 %v1395, %v1394
    %v1406 = vpack.c.b16 %v1397, %v1396
    %v1407 = vpack.c.b16 %v1399, %v1398
    %v1408 = vpack.c.b16 %v1400, %v1400
    %vm1416 = vcmask 982016
    %v1418 = vsel %vm1416, %v1355, 0
    %v1421 = vsel %vm359, %v1408, 0
    %1423 = vmatpush.bf16.msra.mxu0 %v1421
    %1424 = vmatpush.bf16.msra.mxu0 %v1407
    %1425 = vmatpush.bf16.msra.mxu0 %v1406
    %1426 = vmatpush.bf16.msra.mxu0 %v1405
    %1427 = vmatpush.bf16.msra.mxu0 %v1404
    %1428 = vmatpush.bf16.msra.mxu0 %v1403
    %1429 = vmatpush.bf16.msra.mxu0 %v1402
    %1430 = vmatpush.bf16.msra.mxu0 %v1401
    %1431 = vmatmul.bf16.gmra.mxu0 %v1418
    %v1432 = vpop.f32.mrf.mxu0
    %v1433 = vadd.f32 0.0, %v1432
    %v1434 = vpop.f32.mrf.mxu0
    %1435 = vdwg.mxu0
    %vm1436 = vcmask 486400
    %v1437 = vsel %vm1436, %v1433, 0.0
    %v1438 = vrot.slane %v1437, 4
    %v1439 = vadd.f32 %v1437, %v1438
    %v1440 = vrot.slane %v1439, 2
    %v1441 = vadd.f32 %v1439, %v1440
    %v1442 = vrot.slane %v1441, 1
    %v1443 = vadd.f32 %v1441, %v1442
    %v1444 = vmul.f32 %v1443, %v1321
    %v1445 = vmul.f32 %v1433, %v1433
    %v1446 = vsel %vm1436, %v1445, 0.0
    %v1447 = vrot.slane %v1446, 4
    %v1448 = vadd.f32 %v1446, %v1447
    %v1449 = vrot.slane %v1448, 2
    %v1450 = vadd.f32 %v1448, %v1449
    %v1451 = vrot.slane %v1450, 1
    %v1452 = vadd.f32 %v1450, %v1451
    %v1453 = vmul.f32 %v1452, %v1321
    %v1454 = vmul.f32 %v1444, %v1444
    %v1455 = vsub.f32 %v1453, %v1454
    %v1456 = vld [vmem:[%s6] sm:$0x1]
    %v1457 = vadd.f32 %v1455, 1e-05
    %v1458 = vrsqrt.pop %v1457
    %v1459 = vmul.f32 %v1458, %v1457
    %v1460 = vmul.f32 %v1459, %v1458
    %v1461 = vmul.f32 0.5, %v1460
    %v1462 = vsub.f32 1.5, %v1461
    %v1463 = vmul.f32 %v1458, %v1462
    %vm1464 = vweird.f32 %v1457
    %vm1465 = vweird.f32 %v1458
    %vm1466 = vmor %vm1464, %vm1465
    %v1467 = vsel %vm1466, %v1458, %v1463
    %v1468 = vmul.f32 %v1456, %v1467
    %v1469 = vld [vmem:[%s6 + $0x1] sm:$0x1]
    %v1470 = vmul.f32 %v1444, %v1468
    %v1471 = vsub.f32 %v1469, %v1470
    %v1472 = vperm.slane %v1468, 0
    %v1473 = vmul.f32 %v1433, %v1472
    %v1474 = vperm.slane %v1471, 0
    %v1475 = vadd.f32 %v1473, %v1474
    %v1476 = vmax.f32 %v1475, 0.0
    %v1477 = vpack.c.bf16 %v1476, %v1476
    %v1478 = vld [vmem:[%s7] sm:$0xf]
    %v1479 = vld [vmem:[%s7 + $0x4] sm:$0xf]
    %v1480 = vld [vmem:[%s7 + $0x8] sm:$0xf]
    %v1481 = vld [vmem:[%s7 + $0xc] sm:$0xf]
    %v1482 = vld [vmem:[%s7 + $0x10] sm:$0xf]
    %v1483 = vld [vmem:[%s7 + $0x14] sm:$0xf]
    %v1484 = vld [vmem:[%s7 + $0x18] sm:$0xf]
    %v1485 = vld [vmem:[%s7 + $0x1c] sm:$0x3]
    %v1486 = vld [vmem:[%s8] sm:$0x1]
    %v1488 = vperm.slane %v1486, 0
    %v1498 = vunpack.c.l.b16 %v1478
    %v1499 = vunpack.c.l.b16 %v1479
    %v1500 = vunpack.c.l.b16 %v1480
    %v1501 = vunpack.c.l.b16 %v1481
    %v1502 = vunpack.c.l.b16 %v1482
    %v1503 = vunpack.c.l.b16 %v1483
    %v1504 = vunpack.c.l.b16 %v1484
    %v1505 = vunpack.c.l.b16 %v1485
    %v1506 = vpack.c.b16 %v1499, %v1498
    %v1507 = vpack.c.b16 %v1501, %v1500
    %v1508 = vpack.c.b16 %v1503, %v1502
    %v1509 = vpack.c.b16 %v1505, %v1504
    %vm1513 = vcmask 490496
    %v1515 = vsel %vm1513, %v1477, 0
    %vm1517 = vcmask 1045504
    %v1519 = vsel %vm1517, %v1509, 0
    %1521 = vmatpush.bf16.msra.mxu0 0
    %1522 = vmatpush.bf16.msra.mxu0 0
    %1523 = vmatpush.bf16.msra.mxu0 0
    %1524 = vmatpush.bf16.msra.mxu0 0
    %1525 = vmatpush.bf16.msra.mxu0 %v1519
    %1526 = vmatpush.bf16.msra.mxu0 %v1508
    %1527 = vmatpush.bf16.msra.mxu0 %v1507
    %1528 = vmatpush.bf16.msra.mxu0 %v1506
    %1529 = vmatmul.bf16.gmra.mxu0 %v1515
    %v1530 = vpop.f32.mrf.mxu0
    %v1531 = vadd.f32 %v1488, %v1530
    %v1532 = vpop.f32.mrf.mxu0
    %1533 = vdwg.mxu0
    %vm1534 = vcmask 76800
    %1535 = vst.msk [vmem:[#allocation3] sm:$0xf] %vm1534, %v1531
    // Predicated region
    $region38: #{network_forward.3} parent=1 // pred_check
      _
    $region39: #{network_forward.3} parent=1 // pred_check_branch
      %1537 = sbr.rel (0) target = $region41
    $region40: #{network_forward.3} parent=1 // pred_region
      %1539 = vsyncadd [#allocation4], 0
      %s1541 = sshll.u32 [#allocation3], 4
      %s1542 = int_to_ptr.vmem [resolvable:$true] %s1541
      %s1543 = sshll.u32 %s9, 4
      %s1544 = int_to_ptr.hbm [resolvable:$true] %s1543
      %1546 = dma.vmem_to_hbm [thread:$0]  %s1542, 64, %s1544, [#allocation4]
    $region41: #{network_forward.3} parent=1 // pred_fallthru
      _
    // Predicated region
    $region42: #{network_forward.3} parent=1 // pred_check
      _
    $region43: #{network_forward.3} parent=1 // pred_check_branch
      %1548 = sbr.rel (0) target = $region45
    $region44: #{network_forward.3} parent=1 // pred_region
      %1550 = dma.done [#allocation4], 64
    $region45: #{network_forward.3} parent=1 // pred_fallthru
      _
    %1551 = vsyncpa [#allocation4], 1

</llo_original>
